<compile_context>
chip_gen: v5e
topology: v5e:2x2
jax: 0.10.0
libtpu: 0.0.40
codegen_flags: <defaults>
</compile_context>

<pallas_src>
import numpy as np
import jax
import jax.numpy as jnp
from jax import lax
from jax.experimental import pallas as pl
from jax.experimental.pallas import tpu as pltpu


def _round_up(v, m):
    return ((v + m - 1) // m) * m


# ----------------------------- fused CBAM kernel -----------------------------
def _make_cbam_kernel(C, H, W, K):
    HW = H * W
    pad = (K - 1) // 2
    # flat offset of mm[r=0, q=0] inside the zero-padded, row-major-flattened map
    off0 = pad * W + pad

    def kernel(x_ref, fcw_ref, fcb_ref, spw_ref, o_ref, pads_ref):
        # -------- channel attention: pool -> 1x1 fc(+bias) -> sigmoid -> scale
        x = x_ref[0].astype(jnp.float32)                        # (C, HW) lane-dense
        pooled = jnp.mean(x, axis=1, keepdims=True)             # (C, 1) global avg pool
        z = jnp.dot(fcw_ref[...].astype(jnp.float32), pooled,
                    preferred_element_type=jnp.float32)
        z = z + fcb_ref[...].astype(jnp.float32)                # (C, 1)
        y = x * jax.nn.sigmoid(z)                               # (C, HW)

        # -------- spatial attention, entirely in VMEM
        # pads_ref holds a zero-padded, row-major-flattened (H+2p, W) map per
        # channel; it persists across grid steps, so re-zero every step.
        pads_ref[...] = jnp.zeros_like(pads_ref)
        mean_c = jnp.mean(y, axis=0, keepdims=True)             # (1, HW)
        max_c = jnp.max(y, axis=0, keepdims=True)               # (1, HW)
        pads_ref[pl.ds(0, 1), pl.ds(off0, HW)] = mean_c
        pads_ref[pl.ds(1, 1), pl.ds(off0, HW)] = max_c

        # KxK conv (2 in-channels -> 1), fully unrolled on the flat lane-dense
        # layout: the (di, dj) shift is one lane-offset slice of the scratch ref;
        # the column-validity mask depends only on dj, so it is applied once per
        # (channel, dj) group of K accumulated terms.
        lane = lax.broadcasted_iota(jnp.int32, (1, HW), 1)
        if (W & (W - 1)) == 0:
            col = lane & (W - 1)
        else:
            col = lane % W
        acc = jnp.zeros((1, HW), jnp.float32)
        for c in range(2):
            for dj in range(K):
                valid = (col + dj >= pad) & (col + dj <= W - 1 + pad)
                tmp = jnp.zeros((1, HW), jnp.float32)
                for di in range(K):
                    w = spw_ref[c * K * K + di * K + dj]        # f32 scalar from SMEM
                    tmp = tmp + w * pads_ref[pl.ds(c, 1), pl.ds(di * W + dj, HW)]
                acc = acc + jnp.where(valid, tmp, 0.0)

        o_ref[0] = (y * jax.nn.sigmoid(acc)).astype(o_ref.dtype)

    return kernel, off0, pad


# ----------------------------- wrapper ---------------------------------------
def cbam_pallas(x, fc_w, fc_b, sp_w, kernel_size=7):
    N, C, H, W = x.shape
    HW = H * W
    K = kernel_size
    kernel, off0, _ = _make_cbam_kernel(C, H, W, K)

    # flat padded-map length: must cover the largest shifted read and the write
    max_start = (K - 1) * W + (K - 1)
    pflat = _round_up(max(off0, max_start) + HW, 128)

    x2 = x.reshape(N, C, HW)                    # lane-dense (HW on lanes)
    fc_b2 = fc_b.reshape(C, 1)
    sp_flat = sp_w.reshape(2 * K * K).astype(jnp.float32)

    itemsize = np.dtype(x.dtype).itemsize
    cost = pl.CostEstimate(
        flops=int(N * (2 * C * C + 6 * C * HW + 4 * K * K * HW)),
        transcendentals=int(N * (C + HW)),
        bytes_accessed=int(2 * N * C * HW * itemsize + (C * C + C + 2 * K * K) * 4),
    )

    out = pl.pallas_call(
        kernel,
        out_shape=jax.ShapeDtypeStruct((N, C, HW), x.dtype),
        grid_spec=pltpu.PrefetchScalarGridSpec(
            num_scalar_prefetch=0,
            grid=(N,),
            in_specs=[
                pl.BlockSpec((1, C, HW), lambda b: (b, 0, 0)),                 # x
                pl.BlockSpec((C, C), lambda b: (0, 0)),                        # fc weight
                pl.BlockSpec((C, 1), lambda b: (0, 0)),                        # fc bias
                pl.BlockSpec(memory_space=pltpu.MemorySpace.SMEM),             # conv weights
            ],
            out_specs=pl.BlockSpec((1, C, HW), lambda b: (b, 0, 0)),
            scratch_shapes=[pltpu.VMEM((2, pflat), jnp.float32)],
        ),
        compiler_params=pltpu.CompilerParams(dimension_semantics=("parallel",)),
        cost_estimate=cost,
    )(x2, fc_w, fc_b2, sp_flat)
    return out.reshape(N, C, H, W)


# ----------------------------- pure-JAX reference ----------------------------
def cbam_ref(x, fc_w, fc_b, sp_w, pad):
    pooled = jnp.mean(x, axis=(2, 3), keepdims=True)                           # (N,C,1,1)
    z = jnp.einsum('oc,ncij->noij', fc_w, pooled) + fc_b[None, :, None, None]
    y = x * jax.nn.sigmoid(z)
    mm = jnp.concatenate([jnp.mean(y, axis=1, keepdims=True),
                          jnp.max(y, axis=1, keepdims=True)], axis=1)          # (N,2,H,W)
    conv = lax.conv_general_dilated(
        mm, sp_w[None], window_strides=(1, 1),
        padding=[(pad, pad), (pad, pad)],
        dimension_numbers=('NCHW', 'OIHW', 'NCHW'))                             # (N,1,H,W)
    return y * jax.nn.sigmoid(conv)


if __name__ == "__main__":
    N, C, H, W = 2, 4, 16, 16
    K = 7
    pad = 3

    key = jax.random.PRNGKey(0)
    k1, k2, k3, k4 = jax.random.split(key, 4)
    x = jax.random.normal(k1, (N, C, H, W), jnp.float32)
    # ChannelAttention.fc = Conv2d(C, C, 1, bias=True) -> weight (C, C), bias (C,)
    fc_w = jax.random.normal(k2, (C, C), jnp.float32) * 0.5
    fc_b = jax.random.normal(k3, (C,), jnp.float32) * 0.1
    # SpatialAttention.cv1 = Conv2d(2, 1, 7, padding=3, bias=False) -> (2, 7, 7)
    sp_w = jax.random.normal(k4, (2, K, K), jnp.float32) * 0.1

    out = jax.block_until_ready(cbam_pallas(x, fc_w, fc_b, sp_w, kernel_size=K))
    ref = jax.block_until_ready(cbam_ref(x, fc_w, fc_b, sp_w, pad))
    np.testing.assert_allclose(np.asarray(out), np.asarray(ref), rtol=1e-4, atol=1e-4)

    print("KERNEL_OK")
</pallas_src>

<mosaic_0001>
module attributes {stable_mosaic.version = 11 : i64} {
  func.func @kernel(%arg0: i32, %arg1: memref<1x4x256xf32, #tpu.memory_space<vmem>>, %arg2: memref<4x4xf32, #tpu.memory_space<vmem>>, %arg3: memref<4x1xf32, #tpu.memory_space<vmem>>, %arg4: memref<98xf32, #tpu.memory_space<smem>>, %arg5: memref<1x4x256xf32, #tpu.memory_space<vmem>>, %arg6: memref<2x384xf32, #tpu.memory_space<vmem>>) attributes {dimension_semantics = [#tpu.dimension_semantics<parallel>], iteration_bounds = array<i64: 2>, scalar_prefetch = 0 : i64, scratch_operands = 1 : i64, tpu.core_type = #tpu.core_type<tc>, window_params = [{transform_indices = @transform_0, window_bounds = array<i64: 1, 4, 256>}, {pipeline_mode = #tpu.pipeline_mode<synchronous>, transform_indices = @transform_1, window_bounds = array<i64: 4, 4>}, {pipeline_mode = #tpu.pipeline_mode<synchronous>, transform_indices = @transform_2, window_bounds = array<i64: 4, 1>}, {transform_indices = @transform_3, window_bounds = array<i64: 98>}, {transform_indices = @transform_4, window_bounds = array<i64: 1, 4, 256>}]} {
    %c0 = arith.constant 0 : index
    %c0_0 = arith.constant 0 : index
    %c0_1 = arith.constant 0 : index
    %0 = vector.load %arg1[%c0, %c0_0, %c0_1] : memref<1x4x256xf32, #tpu.memory_space<vmem>>, vector<1x4x256xf32>
    %1 = vector.shape_cast %0 : vector<1x4x256xf32> to vector<4x256xf32>
    %cst = arith.constant dense<0.000000e+00> : vector<4xf32>
    %2 = vector.multi_reduction <add>, %1, %cst [1] : vector<4x256xf32> to vector<4xf32>
    %3 = vector.shape_cast %2 : vector<4xf32> to vector<4x1xf32>
    %cst_2 = arith.constant 2.560000e+02 : f32
    %4 = vector.broadcast %cst_2 : f32 to vector<4x1xf32>
    %5 = arith.divf %3, %4 : vector<4x1xf32>
    %c0_3 = arith.constant 0 : index
    %c0_4 = arith.constant 0 : index
    %6 = vector.load %arg2[%c0_3, %c0_4] : memref<4x4xf32, #tpu.memory_space<vmem>>, vector<4x4xf32>
    %cst_5 = arith.constant dense<0.000000e+00> : vector<4x1xf32>
    %7 = tpu.matmul %6, %5, %cst_5 {dimension_numbers = #tpu.dot_dimension_numbers<[1], [0], [0], [1], [0, 0, 1, 1], [], []>} : vector<4x4xf32>, vector<4x1xf32>, vector<4x1xf32> -> vector<4x1xf32>
    %c0_6 = arith.constant 0 : index
    %c0_7 = arith.constant 0 : index
    %8 = vector.load %arg3[%c0_6, %c0_7] : memref<4x1xf32, #tpu.memory_space<vmem>>, vector<4x1xf32>
    %9 = arith.addf %7, %8 : vector<4x1xf32>
    %10 = arith.negf %9 : vector<4x1xf32>
    %11 = math.exp %10 : vector<4x1xf32>
    %cst_8 = arith.constant 1.000000e+00 : f32
    %12 = vector.broadcast %cst_8 : f32 to vector<4x1xf32>
    %13 = arith.addf %12, %11 : vector<4x1xf32>
    %14 = arith.divf %12, %13 : vector<4x1xf32>
    %15 = vector.broadcast %14 : vector<4x1xf32> to vector<4x256xf32>
    %16 = arith.mulf %1, %15 : vector<4x256xf32>
    %cst_9 = arith.constant 0.000000e+00 : f32
    %17 = vector.broadcast %cst_9 : f32 to vector<2x384xf32>
    %c0_10 = arith.constant 0 : index
    %c0_11 = arith.constant 0 : index
    %18 = vector.load %arg6[%c0_10, %c0_11] : memref<2x384xf32, #tpu.memory_space<vmem>>, vector<2x384xf32>
    tpu.vector_store %arg6[%c0_10, %c0_11], %17 {strides = array<i32>} : memref<2x384xf32, #tpu.memory_space<vmem>>, vector<2x384xf32>,
    %cst_12 = arith.constant dense<0.000000e+00> : vector<256xf32>
    %19 = vector.multi_reduction <add>, %16, %cst_12 [0] : vector<4x256xf32> to vector<256xf32>
    %20 = vector.shape_cast %19 : vector<256xf32> to vector<1x256xf32>
    %cst_13 = arith.constant 4.000000e+00 : f32
    %21 = vector.broadcast %cst_13 : f32 to vector<1x256xf32>
    %22 = arith.divf %20, %21 : vector<1x256xf32>
    %cst_14 = arith.constant dense<0xFF800000> : vector<256xf32>
    %23 = vector.multi_reduction <maximumf>, %16, %cst_14 [0] : vector<4x256xf32> to vector<256xf32>
    %24 = vector.shape_cast %23 : vector<256xf32> to vector<1x256xf32>
    %c0_15 = arith.constant 0 : index
    %c51 = arith.constant 51 : index
    %25 = vector.load %arg6[%c0_15, %c51] : memref<2x384xf32, #tpu.memory_space<vmem>>, vector<1x256xf32>
    tpu.vector_store %arg6[%c0_15, %c51], %22 {strides = array<i32>} : memref<2x384xf32, #tpu.memory_space<vmem>>, vector<1x256xf32>,
    %c1 = arith.constant 1 : index
    %c51_16 = arith.constant 51 : index
    %26 = vector.load %arg6[%c1, %c51_16] : memref<2x384xf32, #tpu.memory_space<vmem>>, vector<1x256xf32>
    tpu.vector_store %arg6[%c1, %c51_16], %24 {strides = array<i32>} : memref<2x384xf32, #tpu.memory_space<vmem>>, vector<1x256xf32>,
    %27 = tpu.iota {dimensions = array<i32: 1>} : vector<1x256xi32>
    %c15_i32 = arith.constant 15 : i32
    %28 = vector.broadcast %c15_i32 : i32 to vector<1x256xi32>
    %29 = arith.andi %27, %28 : vector<1x256xi32>
    %cst_17 = arith.constant 0.000000e+00 : f32
    %30 = vector.broadcast %cst_17 : f32 to vector<1x256xf32>
    %c0_i32 = arith.constant 0 : i32
    %31 = vector.broadcast %c0_i32 : i32 to vector<1x256xi32>
    %32 = arith.addi %29, %31 : vector<1x256xi32>
    %c3_i32 = arith.constant 3 : i32
    %33 = vector.broadcast %c3_i32 : i32 to vector<1x256xi32>
    %34 = arith.cmpi sge, %32, %33 : vector<1x256xi32>
    %c0_i32_18 = arith.constant 0 : i32
    %35 = vector.broadcast %c0_i32_18 : i32 to vector<1x256xi32>
    %36 = arith.addi %29, %35 : vector<1x256xi32>
    %c18_i32 = arith.constant 18 : i32
    %37 = vector.broadcast %c18_i32 : i32 to vector<1x256xi32>
    %38 = arith.cmpi sle, %36, %37 : vector<1x256xi32>
    %39 = arith.andi %34, %38 : vector<1x256xi1>
    %cst_19 = arith.constant 0.000000e+00 : f32
    %40 = vector.broadcast %cst_19 : f32 to vector<1x256xf32>
    %c0_20 = arith.constant 0 : index
    %41 = memref.load %arg4[%c0_20] : memref<98xf32, #tpu.memory_space<smem>>
    %c0_21 = arith.constant 0 : index
    %c0_22 = arith.constant 0 : index
    %42 = vector.load %arg6[%c0_21, %c0_22] : memref<2x384xf32, #tpu.memory_space<vmem>>, vector<1x256xf32>
    %43 = vector.broadcast %41 : f32 to vector<1x256xf32>
    %44 = arith.mulf %43, %42 : vector<1x256xf32>
    %45 = arith.addf %40, %44 : vector<1x256xf32>
    %c7 = arith.constant 7 : index
    %46 = memref.load %arg4[%c7] : memref<98xf32, #tpu.memory_space<smem>>
    %c0_23 = arith.constant 0 : index
    %c16 = arith.constant 16 : index
    %47 = vector.load %arg6[%c0_23, %c16] : memref<2x384xf32, #tpu.memory_space<vmem>>, vector<1x256xf32>
    %48 = vector.broadcast %46 : f32 to vector<1x256xf32>
    %49 = arith.mulf %48, %47 : vector<1x256xf32>
    %50 = arith.addf %45, %49 : vector<1x256xf32>
    %c14 = arith.constant 14 : index
    %51 = memref.load %arg4[%c14] : memref<98xf32, #tpu.memory_space<smem>>
    %c0_24 = arith.constant 0 : index
    %c32 = arith.constant 32 : index
    %52 = vector.load %arg6[%c0_24, %c32] : memref<2x384xf32, #tpu.memory_space<vmem>>, vector<1x256xf32>
    %53 = vector.broadcast %51 : f32 to vector<1x256xf32>
    %54 = arith.mulf %53, %52 : vector<1x256xf32>
    %55 = arith.addf %50, %54 : vector<1x256xf32>
    %c21 = arith.constant 21 : index
    %56 = memref.load %arg4[%c21] : memref<98xf32, #tpu.memory_space<smem>>
    %c0_25 = arith.constant 0 : index
    %c48 = arith.constant 48 : index
    %57 = vector.load %arg6[%c0_25, %c48] : memref<2x384xf32, #tpu.memory_space<vmem>>, vector<1x256xf32>
    %58 = vector.broadcast %56 : f32 to vector<1x256xf32>
    %59 = arith.mulf %58, %57 : vector<1x256xf32>
    %60 = arith.addf %55, %59 : vector<1x256xf32>
    %c28 = arith.constant 28 : index
    %61 = memref.load %arg4[%c28] : memref<98xf32, #tpu.memory_space<smem>>
    %c0_26 = arith.constant 0 : index
    %c64 = arith.constant 64 : index
    %62 = vector.load %arg6[%c0_26, %c64] : memref<2x384xf32, #tpu.memory_space<vmem>>, vector<1x256xf32>
    %63 = vector.broadcast %61 : f32 to vector<1x256xf32>
    %64 = arith.mulf %63, %62 : vector<1x256xf32>
    %65 = arith.addf %60, %64 : vector<1x256xf32>
    %c35 = arith.constant 35 : index
    %66 = memref.load %arg4[%c35] : memref<98xf32, #tpu.memory_space<smem>>
    %c0_27 = arith.constant 0 : index
    %c80 = arith.constant 80 : index
    %67 = vector.load %arg6[%c0_27, %c80] : memref<2x384xf32, #tpu.memory_space<vmem>>, vector<1x256xf32>
    %68 = vector.broadcast %66 : f32 to vector<1x256xf32>
    %69 = arith.mulf %68, %67 : vector<1x256xf32>
    %70 = arith.addf %65, %69 : vector<1x256xf32>
    %c42 = arith.constant 42 : index
    %71 = memref.load %arg4[%c42] : memref<98xf32, #tpu.memory_space<smem>>
    %c0_28 = arith.constant 0 : index
    %c96 = arith.constant 96 : index
    %72 = vector.load %arg6[%c0_28, %c96] : memref<2x384xf32, #tpu.memory_space<vmem>>, vector<1x256xf32>
    %73 = vector.broadcast %71 : f32 to vector<1x256xf32>
    %74 = arith.mulf %73, %72 : vector<1x256xf32>
    %75 = arith.addf %70, %74 : vector<1x256xf32>
    %cst_29 = arith.constant 0.000000e+00 : f32
    %76 = vector.broadcast %cst_29 : f32 to vector<1x256xf32>
    %77 = arith.select %39, %75, %76 : vector<1x256xi1>, vector<1x256xf32>
    %78 = arith.addf %30, %77 : vector<1x256xf32>
    %c1_i32 = arith.constant 1 : i32
    %79 = vector.broadcast %c1_i32 : i32 to vector<1x256xi32>
    %80 = arith.addi %29, %79 : vector<1x256xi32>
    %c3_i32_30 = arith.constant 3 : i32
    %81 = vector.broadcast %c3_i32_30 : i32 to vector<1x256xi32>
    %82 = arith.cmpi sge, %80, %81 : vector<1x256xi32>
    %c1_i32_31 = arith.constant 1 : i32
    %83 = vector.broadcast %c1_i32_31 : i32 to vector<1x256xi32>
    %84 = arith.addi %29, %83 : vector<1x256xi32>
    %c18_i32_32 = arith.constant 18 : i32
    %85 = vector.broadcast %c18_i32_32 : i32 to vector<1x256xi32>
    %86 = arith.cmpi sle, %84, %85 : vector<1x256xi32>
    %87 = arith.andi %82, %86 : vector<1x256xi1>
    %cst_33 = arith.constant 0.000000e+00 : f32
    %88 = vector.broadcast %cst_33 : f32 to vector<1x256xf32>
    %c1_34 = arith.constant 1 : index
    %89 = memref.load %arg4[%c1_34] : memref<98xf32, #tpu.memory_space<smem>>
    %c0_35 = arith.constant 0 : index
    %c1_36 = arith.constant 1 : index
    %90 = vector.load %arg6[%c0_35, %c1_36] : memref<2x384xf32, #tpu.memory_space<vmem>>, vector<1x256xf32>
    %91 = vector.broadcast %89 : f32 to vector<1x256xf32>
    %92 = arith.mulf %91, %90 : vector<1x256xf32>
    %93 = arith.addf %88, %92 : vector<1x256xf32>
    %c8 = arith.constant 8 : index
    %94 = memref.load %arg4[%c8] : memref<98xf32, #tpu.memory_space<smem>>
    %c0_37 = arith.constant 0 : index
    %c17 = arith.constant 17 : index
    %95 = vector.load %arg6[%c0_37, %c17] : memref<2x384xf32, #tpu.memory_space<vmem>>, vector<1x256xf32>
    %96 = vector.broadcast %94 : f32 to vector<1x256xf32>
    %97 = arith.mulf %96, %95 : vector<1x256xf32>
    %98 = arith.addf %93, %97 : vector<1x256xf32>
    %c15 = arith.constant 15 : index
    %99 = memref.load %arg4[%c15] : memref<98xf32, #tpu.memory_space<smem>>
    %c0_38 = arith.constant 0 : index
    %c33 = arith.constant 33 : index
    %100 = vector.load %arg6[%c0_38, %c33] : memref<2x384xf32, #tpu.memory_space<vmem>>, vector<1x256xf32>
    %101 = vector.broadcast %99 : f32 to vector<1x256xf32>
    %102 = arith.mulf %101, %100 : vector<1x256xf32>
    %103 = arith.addf %98, %102 : vector<1x256xf32>
    %c22 = arith.constant 22 : index
    %104 = memref.load %arg4[%c22] : memref<98xf32, #tpu.memory_space<smem>>
    %c0_39 = arith.constant 0 : index
    %c49 = arith.constant 49 : index
    %105 = vector.load %arg6[%c0_39, %c49] : memref<2x384xf32, #tpu.memory_space<vmem>>, vector<1x256xf32>
    %106 = vector.broadcast %104 : f32 to vector<1x256xf32>
    %107 = arith.mulf %106, %105 : vector<1x256xf32>
    %108 = arith.addf %103, %107 : vector<1x256xf32>
    %c29 = arith.constant 29 : index
    %109 = memref.load %arg4[%c29] : memref<98xf32, #tpu.memory_space<smem>>
    %c0_40 = arith.constant 0 : index
    %c65 = arith.constant 65 : index
    %110 = vector.load %arg6[%c0_40, %c65] : memref<2x384xf32, #tpu.memory_space<vmem>>, vector<1x256xf32>
    %111 = vector.broadcast %109 : f32 to vector<1x256xf32>
    %112 = arith.mulf %111, %110 : vector<1x256xf32>
    %113 = arith.addf %108, %112 : vector<1x256xf32>
    %c36 = arith.constant 36 : index
    %114 = memref.load %arg4[%c36] : memref<98xf32, #tpu.memory_space<smem>>
    %c0_41 = arith.constant 0 : index
    %c81 = arith.constant 81 : index
    %115 = vector.load %arg6[%c0_41, %c81] : memref<2x384xf32, #tpu.memory_space<vmem>>, vector<1x256xf32>
    %116 = vector.broadcast %114 : f32 to vector<1x256xf32>
    %117 = arith.mulf %116, %115 : vector<1x256xf32>
    %118 = arith.addf %113, %117 : vector<1x256xf32>
    %c43 = arith.constant 43 : index
    %119 = memref.load %arg4[%c43] : memref<98xf32, #tpu.memory_space<smem>>
    %c0_42 = arith.constant 0 : index
    %c97 = arith.constant 97 : index
    %120 = vector.load %arg6[%c0_42, %c97] : memref<2x384xf32, #tpu.memory_space<vmem>>, vector<1x256xf32>
    %121 = vector.broadcast %119 : f32 to vector<1x256xf32>
    %122 = arith.mulf %121, %120 : vector<1x256xf32>
    %123 = arith.addf %118, %122 : vector<1x256xf32>
    %cst_43 = arith.constant 0.000000e+00 : f32
    %124 = vector.broadcast %cst_43 : f32 to vector<1x256xf32>
    %125 = arith.select %87, %123, %124 : vector<1x256xi1>, vector<1x256xf32>
    %126 = arith.addf %78, %125 : vector<1x256xf32>
    %c2_i32 = arith.constant 2 : i32
    %127 = vector.broadcast %c2_i32 : i32 to vector<1x256xi32>
    %128 = arith.addi %29, %127 : vector<1x256xi32>
    %c3_i32_44 = arith.constant 3 : i32
    %129 = vector.broadcast %c3_i32_44 : i32 to vector<1x256xi32>
    %130 = arith.cmpi sge, %128, %129 : vector<1x256xi32>
    %c2_i32_45 = arith.constant 2 : i32
    %131 = vector.broadcast %c2_i32_45 : i32 to vector<1x256xi32>
    %132 = arith.addi %29, %131 : vector<1x256xi32>
    %c18_i32_46 = arith.constant 18 : i32
    %133 = vector.broadcast %c18_i32_46 : i32 to vector<1x256xi32>
    %134 = arith.cmpi sle, %132, %133 : vector<1x256xi32>
    %135 = arith.andi %130, %134 : vector<1x256xi1>
    %cst_47 = arith.constant 0.000000e+00 : f32
    %136 = vector.broadcast %cst_47 : f32 to vector<1x256xf32>
    %c2 = arith.constant 2 : index
    %137 = memref.load %arg4[%c2] : memref<98xf32, #tpu.memory_space<smem>>
    %c0_48 = arith.constant 0 : index
    %c2_49 = arith.constant 2 : index
    %138 = vector.load %arg6[%c0_48, %c2_49] : memref<2x384xf32, #tpu.memory_space<vmem>>, vector<1x256xf32>
    %139 = vector.broadcast %137 : f32 to vector<1x256xf32>
    %140 = arith.mulf %139, %138 : vector<1x256xf32>
    %141 = arith.addf %136, %140 : vector<1x256xf32>
    %c9 = arith.constant 9 : index
    %142 = memref.load %arg4[%c9] : memref<98xf32, #tpu.memory_space<smem>>
    %c0_50 = arith.constant 0 : index
    %c18 = arith.constant 18 : index
    %143 = vector.load %arg6[%c0_50, %c18] : memref<2x384xf32, #tpu.memory_space<vmem>>, vector<1x256xf32>
    %144 = vector.broadcast %142 : f32 to vector<1x256xf32>
    %145 = arith.mulf %144, %143 : vector<1x256xf32>
    %146 = arith.addf %141, %145 : vector<1x256xf32>
    %c16_51 = arith.constant 16 : index
    %147 = memref.load %arg4[%c16_51] : memref<98xf32, #tpu.memory_space<smem>>
    %c0_52 = arith.constant 0 : index
    %c34 = arith.constant 34 : index
    %148 = vector.load %arg6[%c0_52, %c34] : memref<2x384xf32, #tpu.memory_space<vmem>>, vector<1x256xf32>
    %149 = vector.broadcast %147 : f32 to vector<1x256xf32>
    %150 = arith.mulf %149, %148 : vector<1x256xf32>
    %151 = arith.addf %146, %150 : vector<1x256xf32>
    %c23 = arith.constant 23 : index
    %152 = memref.load %arg4[%c23] : memref<98xf32, #tpu.memory_space<smem>>
    %c0_53 = arith.constant 0 : index
    %c50 = arith.constant 50 : index
    %153 = vector.load %arg6[%c0_53, %c50] : memref<2x384xf32, #tpu.memory_space<vmem>>, vector<1x256xf32>
    %154 = vector.broadcast %152 : f32 to vector<1x256xf32>
    %155 = arith.mulf %154, %153 : vector<1x256xf32>
    %156 = arith.addf %151, %155 : vector<1x256xf32>
    %c30 = arith.constant 30 : index
    %157 = memref.load %arg4[%c30] : memref<98xf32, #tpu.memory_space<smem>>
    %c0_54 = arith.constant 0 : index
    %c66 = arith.constant 66 : index
    %158 = vector.load %arg6[%c0_54, %c66] : memref<2x384xf32, #tpu.memory_space<vmem>>, vector<1x256xf32>
    %159 = vector.broadcast %157 : f32 to vector<1x256xf32>
    %160 = arith.mulf %159, %158 : vector<1x256xf32>
    %161 = arith.addf %156, %160 : vector<1x256xf32>
    %c37 = arith.constant 37 : index
    %162 = memref.load %arg4[%c37] : memref<98xf32, #tpu.memory_space<smem>>
    %c0_55 = arith.constant 0 : index
    %c82 = arith.constant 82 : index
    %163 = vector.load %arg6[%c0_55, %c82] : memref<2x384xf32, #tpu.memory_space<vmem>>, vector<1x256xf32>
    %164 = vector.broadcast %162 : f32 to vector<1x256xf32>
    %165 = arith.mulf %164, %163 : vector<1x256xf32>
    %166 = arith.addf %161, %165 : vector<1x256xf32>
    %c44 = arith.constant 44 : index
    %167 = memref.load %arg4[%c44] : memref<98xf32, #tpu.memory_space<smem>>
    %c0_56 = arith.constant 0 : index
    %c98 = arith.constant 98 : index
    %168 = vector.load %arg6[%c0_56, %c98] : memref<2x384xf32, #tpu.memory_space<vmem>>, vector<1x256xf32>
    %169 = vector.broadcast %167 : f32 to vector<1x256xf32>
    %170 = arith.mulf %169, %168 : vector<1x256xf32>
    %171 = arith.addf %166, %170 : vector<1x256xf32>
    %cst_57 = arith.constant 0.000000e+00 : f32
    %172 = vector.broadcast %cst_57 : f32 to vector<1x256xf32>
    %173 = arith.select %135, %171, %172 : vector<1x256xi1>, vector<1x256xf32>
    %174 = arith.addf %126, %173 : vector<1x256xf32>
    %c3_i32_58 = arith.constant 3 : i32
    %175 = vector.broadcast %c3_i32_58 : i32 to vector<1x256xi32>
    %176 = arith.addi %29, %175 : vector<1x256xi32>
    %c3_i32_59 = arith.constant 3 : i32
    %177 = vector.broadcast %c3_i32_59 : i32 to vector<1x256xi32>
    %178 = arith.cmpi sge, %176, %177 : vector<1x256xi32>
    %c3_i32_60 = arith.constant 3 : i32
    %179 = vector.broadcast %c3_i32_60 : i32 to vector<1x256xi32>
    %180 = arith.addi %29, %179 : vector<1x256xi32>
    %c18_i32_61 = arith.constant 18 : i32
    %181 = vector.broadcast %c18_i32_61 : i32 to vector<1x256xi32>
    %182 = arith.cmpi sle, %180, %181 : vector<1x256xi32>
    %183 = arith.andi %178, %182 : vector<1x256xi1>
    %cst_62 = arith.constant 0.000000e+00 : f32
    %184 = vector.broadcast %cst_62 : f32 to vector<1x256xf32>
    %c3 = arith.constant 3 : index
    %185 = memref.load %arg4[%c3] : memref<98xf32, #tpu.memory_space<smem>>
    %c0_63 = arith.constant 0 : index
    %c3_64 = arith.constant 3 : index
    %186 = vector.load %arg6[%c0_63, %c3_64] : memref<2x384xf32, #tpu.memory_space<vmem>>, vector<1x256xf32>
    %187 = vector.broadcast %185 : f32 to vector<1x256xf32>
    %188 = arith.mulf %187, %186 : vector<1x256xf32>
    %189 = arith.addf %184, %188 : vector<1x256xf32>
    %c10 = arith.constant 10 : index
    %190 = memref.load %arg4[%c10] : memref<98xf32, #tpu.memory_space<smem>>
    %c0_65 = arith.constant 0 : index
    %c19 = arith.constant 19 : index
    %191 = vector.load %arg6[%c0_65, %c19] : memref<2x384xf32, #tpu.memory_space<vmem>>, vector<1x256xf32>
    %192 = vector.broadcast %190 : f32 to vector<1x256xf32>
    %193 = arith.mulf %192, %191 : vector<1x256xf32>
    %194 = arith.addf %189, %193 : vector<1x256xf32>
    %c17_66 = arith.constant 17 : index
    %195 = memref.load %arg4[%c17_66] : memref<98xf32, #tpu.memory_space<smem>>
    %c0_67 = arith.constant 0 : index
    %c35_68 = arith.constant 35 : index
    %196 = vector.load %arg6[%c0_67, %c35_68] : memref<2x384xf32, #tpu.memory_space<vmem>>, vector<1x256xf32>
    %197 = vector.broadcast %195 : f32 to vector<1x256xf32>
    %198 = arith.mulf %197, %196 : vector<1x256xf32>
    %199 = arith.addf %194, %198 : vector<1x256xf32>
    %c24 = arith.constant 24 : index
    %200 = memref.load %arg4[%c24] : memref<98xf32, #tpu.memory_space<smem>>
    %c0_69 = arith.constant 0 : index
    %c51_70 = arith.constant 51 : index
    %201 = vector.load %arg6[%c0_69, %c51_70] : memref<2x384xf32, #tpu.memory_space<vmem>>, vector<1x256xf32>
    %202 = vector.broadcast %200 : f32 to vector<1x256xf32>
    %203 = arith.mulf %202, %201 : vector<1x256xf32>
    %204 = arith.addf %199, %203 : vector<1x256xf32>
    %c31 = arith.constant 31 : index
    %205 = memref.load %arg4[%c31] : memref<98xf32, #tpu.memory_space<smem>>
    %c0_71 = arith.constant 0 : index
    %c67 = arith.constant 67 : index
    %206 = vector.load %arg6[%c0_71, %c67] : memref<2x384xf32, #tpu.memory_space<vmem>>, vector<1x256xf32>
    %207 = vector.broadcast %205 : f32 to vector<1x256xf32>
    %208 = arith.mulf %207, %206 : vector<1x256xf32>
    %209 = arith.addf %204, %208 : vector<1x256xf32>
    %c38 = arith.constant 38 : index
    %210 = memref.load %arg4[%c38] : memref<98xf32, #tpu.memory_space<smem>>
    %c0_72 = arith.constant 0 : index
    %c83 = arith.constant 83 : index
    %211 = vector.load %arg6[%c0_72, %c83] : memref<2x384xf32, #tpu.memory_space<vmem>>, vector<1x256xf32>
    %212 = vector.broadcast %210 : f32 to vector<1x256xf32>
    %213 = arith.mulf %212, %211 : vector<1x256xf32>
    %214 = arith.addf %209, %213 : vector<1x256xf32>
    %c45 = arith.constant 45 : index
    %215 = memref.load %arg4[%c45] : memref<98xf32, #tpu.memory_space<smem>>
    %c0_73 = arith.constant 0 : index
    %c99 = arith.constant 99 : index
    %216 = vector.load %arg6[%c0_73, %c99] : memref<2x384xf32, #tpu.memory_space<vmem>>, vector<1x256xf32>
    %217 = vector.broadcast %215 : f32 to vector<1x256xf32>
    %218 = arith.mulf %217, %216 : vector<1x256xf32>
    %219 = arith.addf %214, %218 : vector<1x256xf32>
    %cst_74 = arith.constant 0.000000e+00 : f32
    %220 = vector.broadcast %cst_74 : f32 to vector<1x256xf32>
    %221 = arith.select %183, %219, %220 : vector<1x256xi1>, vector<1x256xf32>
    %222 = arith.addf %174, %221 : vector<1x256xf32>
    %c4_i32 = arith.constant 4 : i32
    %223 = vector.broadcast %c4_i32 : i32 to vector<1x256xi32>
    %224 = arith.addi %29, %223 : vector<1x256xi32>
    %c3_i32_75 = arith.constant 3 : i32
    %225 = vector.broadcast %c3_i32_75 : i32 to vector<1x256xi32>
    %226 = arith.cmpi sge, %224, %225 : vector<1x256xi32>
    %c4_i32_76 = arith.constant 4 : i32
    %227 = vector.broadcast %c4_i32_76 : i32 to vector<1x256xi32>
    %228 = arith.addi %29, %227 : vector<1x256xi32>
    %c18_i32_77 = arith.constant 18 : i32
    %229 = vector.broadcast %c18_i32_77 : i32 to vector<1x256xi32>
    %230 = arith.cmpi sle, %228, %229 : vector<1x256xi32>
    %231 = arith.andi %226, %230 : vector<1x256xi1>
    %cst_78 = arith.constant 0.000000e+00 : f32
    %232 = vector.broadcast %cst_78 : f32 to vector<1x256xf32>
    %c4 = arith.constant 4 : index
    %233 = memref.load %arg4[%c4] : memref<98xf32, #tpu.memory_space<smem>>
    %c0_79 = arith.constant 0 : index
    %c4_80 = arith.constant 4 : index
    %234 = vector.load %arg6[%c0_79, %c4_80] : memref<2x384xf32, #tpu.memory_space<vmem>>, vector<1x256xf32>
    %235 = vector.broadcast %233 : f32 to vector<1x256xf32>
    %236 = arith.mulf %235, %234 : vector<1x256xf32>
    %237 = arith.addf %232, %236 : vector<1x256xf32>
    %c11 = arith.constant 11 : index
    %238 = memref.load %arg4[%c11] : memref<98xf32, #tpu.memory_space<smem>>
    %c0_81 = arith.constant 0 : index
    %c20 = arith.constant 20 : index
    %239 = vector.load %arg6[%c0_81, %c20] : memref<2x384xf32, #tpu.memory_space<vmem>>, vector<1x256xf32>
    %240 = vector.broadcast %238 : f32 to vector<1x256xf32>
    %241 = arith.mulf %240, %239 : vector<1x256xf32>
    %242 = arith.addf %237, %241 : vector<1x256xf32>
    %c18_82 = arith.constant 18 : index
    %243 = memref.load %arg4[%c18_82] : memref<98xf32, #tpu.memory_space<smem>>
    %c0_83 = arith.constant 0 : index
    %c36_84 = arith.constant 36 : index
    %244 = vector.load %arg6[%c0_83, %c36_84] : memref<2x384xf32, #tpu.memory_space<vmem>>, vector<1x256xf32>
    %245 = vector.broadcast %243 : f32 to vector<1x256xf32>
    %246 = arith.mulf %245, %244 : vector<1x256xf32>
    %247 = arith.addf %242, %246 : vector<1x256xf32>
    %c25 = arith.constant 25 : index
    %248 = memref.load %arg4[%c25] : memref<98xf32, #tpu.memory_space<smem>>
    %c0_85 = arith.constant 0 : index
    %c52 = arith.constant 52 : index
    %249 = vector.load %arg6[%c0_85, %c52] : memref<2x384xf32, #tpu.memory_space<vmem>>, vector<1x256xf32>
    %250 = vector.broadcast %248 : f32 to vector<1x256xf32>
    %251 = arith.mulf %250, %249 : vector<1x256xf32>
    %252 = arith.addf %247, %251 : vector<1x256xf32>
    %c32_86 = arith.constant 32 : index
    %253 = memref.load %arg4[%c32_86] : memref<98xf32, #tpu.memory_space<smem>>
    %c0_87 = arith.constant 0 : index
    %c68 = arith.constant 68 : index
    %254 = vector.load %arg6[%c0_87, %c68] : memref<2x384xf32, #tpu.memory_space<vmem>>, vector<1x256xf32>
    %255 = vector.broadcast %253 : f32 to vector<1x256xf32>
    %256 = arith.mulf %255, %254 : vector<1x256xf32>
    %257 = arith.addf %252, %256 : vector<1x256xf32>
    %c39 = arith.constant 39 : index
    %258 = memref.load %arg4[%c39] : memref<98xf32, #tpu.memory_space<smem>>
    %c0_88 = arith.constant 0 : index
    %c84 = arith.constant 84 : index
    %259 = vector.load %arg6[%c0_88, %c84] : memref<2x384xf32, #tpu.memory_space<vmem>>, vector<1x256xf32>
    %260 = vector.broadcast %258 : f32 to vector<1x256xf32>
    %261 = arith.mulf %260, %259 : vector<1x256xf32>
    %262 = arith.addf %257, %261 : vector<1x256xf32>
    %c46 = arith.constant 46 : index
    %263 = memref.load %arg4[%c46] : memref<98xf32, #tpu.memory_space<smem>>
    %c0_89 = arith.constant 0 : index
    %c100 = arith.constant 100 : index
    %264 = vector.load %arg6[%c0_89, %c100] : memref<2x384xf32, #tpu.memory_space<vmem>>, vector<1x256xf32>
    %265 = vector.broadcast %263 : f32 to vector<1x256xf32>
    %266 = arith.mulf %265, %264 : vector<1x256xf32>
    %267 = arith.addf %262, %266 : vector<1x256xf32>
    %cst_90 = arith.constant 0.000000e+00 : f32
    %268 = vector.broadcast %cst_90 : f32 to vector<1x256xf32>
    %269 = arith.select %231, %267, %268 : vector<1x256xi1>, vector<1x256xf32>
    %270 = arith.addf %222, %269 : vector<1x256xf32>
    %c5_i32 = arith.constant 5 : i32
    %271 = vector.broadcast %c5_i32 : i32 to vector<1x256xi32>
    %272 = arith.addi %29, %271 : vector<1x256xi32>
    %c3_i32_91 = arith.constant 3 : i32
    %273 = vector.broadcast %c3_i32_91 : i32 to vector<1x256xi32>
    %274 = arith.cmpi sge, %272, %273 : vector<1x256xi32>
    %c5_i32_92 = arith.constant 5 : i32
    %275 = vector.broadcast %c5_i32_92 : i32 to vector<1x256xi32>
    %276 = arith.addi %29, %275 : vector<1x256xi32>
    %c18_i32_93 = arith.constant 18 : i32
    %277 = vector.broadcast %c18_i32_93 : i32 to vector<1x256xi32>
    %278 = arith.cmpi sle, %276, %277 : vector<1x256xi32>
    %279 = arith.andi %274, %278 : vector<1x256xi1>
    %cst_94 = arith.constant 0.000000e+00 : f32
    %280 = vector.broadcast %cst_94 : f32 to vector<1x256xf32>
    %c5 = arith.constant 5 : index
    %281 = memref.load %arg4[%c5] : memref<98xf32, #tpu.memory_space<smem>>
    %c0_95 = arith.constant 0 : index
    %c5_96 = arith.constant 5 : index
    %282 = vector.load %arg6[%c0_95, %c5_96] : memref<2x384xf32, #tpu.memory_space<vmem>>, vector<1x256xf32>
    %283 = vector.broadcast %281 : f32 to vector<1x256xf32>
    %284 = arith.mulf %283, %282 : vector<1x256xf32>
    %285 = arith.addf %280, %284 : vector<1x256xf32>
    %c12 = arith.constant 12 : index
    %286 = memref.load %arg4[%c12] : memref<98xf32, #tpu.memory_space<smem>>
    %c0_97 = arith.constant 0 : index
    %c21_98 = arith.constant 21 : index
    %287 = vector.load %arg6[%c0_97, %c21_98] : memref<2x384xf32, #tpu.memory_space<vmem>>, vector<1x256xf32>
    %288 = vector.broadcast %286 : f32 to vector<1x256xf32>
    %289 = arith.mulf %288, %287 : vector<1x256xf32>
    %290 = arith.addf %285, %289 : vector<1x256xf32>
    %c19_99 = arith.constant 19 : index
    %291 = memref.load %arg4[%c19_99] : memref<98xf32, #tpu.memory_space<smem>>
    %c0_100 = arith.constant 0 : index
    %c37_101 = arith.constant 37 : index
    %292 = vector.load %arg6[%c0_100, %c37_101] : memref<2x384xf32, #tpu.memory_space<vmem>>, vector<1x256xf32>
    %293 = vector.broadcast %291 : f32 to vector<1x256xf32>
    %294 = arith.mulf %293, %292 : vector<1x256xf32>
    %295 = arith.addf %290, %294 : vector<1x256xf32>
    %c26 = arith.constant 26 : index
    %296 = memref.load %arg4[%c26] : memref<98xf32, #tpu.memory_space<smem>>
    %c0_102 = arith.constant 0 : index
    %c53 = arith.constant 53 : index
    %297 = vector.load %arg6[%c0_102, %c53] : memref<2x384xf32, #tpu.memory_space<vmem>>, vector<1x256xf32>
    %298 = vector.broadcast %296 : f32 to vector<1x256xf32>
    %299 = arith.mulf %298, %297 : vector<1x256xf32>
    %300 = arith.addf %295, %299 : vector<1x256xf32>
    %c33_103 = arith.constant 33 : index
    %301 = memref.load %arg4[%c33_103] : memref<98xf32, #tpu.memory_space<smem>>
    %c0_104 = arith.constant 0 : index
    %c69 = arith.constant 69 : index
    %302 = vector.load %arg6[%c0_104, %c69] : memref<2x384xf32, #tpu.memory_space<vmem>>, vector<1x256xf32>
    %303 = vector.broadcast %301 : f32 to vector<1x256xf32>
    %304 = arith.mulf %303, %302 : vector<1x256xf32>
    %305 = arith.addf %300, %304 : vector<1x256xf32>
    %c40 = arith.constant 40 : index
    %306 = memref.load %arg4[%c40] : memref<98xf32, #tpu.memory_space<smem>>
    %c0_105 = arith.constant 0 : index
    %c85 = arith.constant 85 : index
    %307 = vector.load %arg6[%c0_105, %c85] : memref<2x384xf32, #tpu.memory_space<vmem>>, vector<1x256xf32>
    %308 = vector.broadcast %306 : f32 to vector<1x256xf32>
    %309 = arith.mulf %308, %307 : vector<1x256xf32>
    %310 = arith.addf %305, %309 : vector<1x256xf32>
    %c47 = arith.constant 47 : index
    %311 = memref.load %arg4[%c47] : memref<98xf32, #tpu.memory_space<smem>>
    %c0_106 = arith.constant 0 : index
    %c101 = arith.constant 101 : index
    %312 = vector.load %arg6[%c0_106, %c101] : memref<2x384xf32, #tpu.memory_space<vmem>>, vector<1x256xf32>
    %313 = vector.broadcast %311 : f32 to vector<1x256xf32>
    %314 = arith.mulf %313, %312 : vector<1x256xf32>
    %315 = arith.addf %310, %314 : vector<1x256xf32>
    %cst_107 = arith.constant 0.000000e+00 : f32
    %316 = vector.broadcast %cst_107 : f32 to vector<1x256xf32>
    %317 = arith.select %279, %315, %316 : vector<1x256xi1>, vector<1x256xf32>
    %318 = arith.addf %270, %317 : vector<1x256xf32>
    %c6_i32 = arith.constant 6 : i32
    %319 = vector.broadcast %c6_i32 : i32 to vector<1x256xi32>
    %320 = arith.addi %29, %319 : vector<1x256xi32>
    %c3_i32_108 = arith.constant 3 : i32
    %321 = vector.broadcast %c3_i32_108 : i32 to vector<1x256xi32>
    %322 = arith.cmpi sge, %320, %321 : vector<1x256xi32>
    %c6_i32_109 = arith.constant 6 : i32
    %323 = vector.broadcast %c6_i32_109 : i32 to vector<1x256xi32>
    %324 = arith.addi %29, %323 : vector<1x256xi32>
    %c18_i32_110 = arith.constant 18 : i32
    %325 = vector.broadcast %c18_i32_110 : i32 to vector<1x256xi32>
    %326 = arith.cmpi sle, %324, %325 : vector<1x256xi32>
    %327 = arith.andi %322, %326 : vector<1x256xi1>
    %cst_111 = arith.constant 0.000000e+00 : f32
    %328 = vector.broadcast %cst_111 : f32 to vector<1x256xf32>
    %c6 = arith.constant 6 : index
    %329 = memref.load %arg4[%c6] : memref<98xf32, #tpu.memory_space<smem>>
    %c0_112 = arith.constant 0 : index
    %c6_113 = arith.constant 6 : index
    %330 = vector.load %arg6[%c0_112, %c6_113] : memref<2x384xf32, #tpu.memory_space<vmem>>, vector<1x256xf32>
    %331 = vector.broadcast %329 : f32 to vector<1x256xf32>
    %332 = arith.mulf %331, %330 : vector<1x256xf32>
    %333 = arith.addf %328, %332 : vector<1x256xf32>
    %c13 = arith.constant 13 : index
    %334 = memref.load %arg4[%c13] : memref<98xf32, #tpu.memory_space<smem>>
    %c0_114 = arith.constant 0 : index
    %c22_115 = arith.constant 22 : index
    %335 = vector.load %arg6[%c0_114, %c22_115] : memref<2x384xf32, #tpu.memory_space<vmem>>, vector<1x256xf32>
    %336 = vector.broadcast %334 : f32 to vector<1x256xf32>
    %337 = arith.mulf %336, %335 : vector<1x256xf32>
    %338 = arith.addf %333, %337 : vector<1x256xf32>
    %c20_116 = arith.constant 20 : index
    %339 = memref.load %arg4[%c20_116] : memref<98xf32, #tpu.memory_space<smem>>
    %c0_117 = arith.constant 0 : index
    %c38_118 = arith.constant 38 : index
    %340 = vector.load %arg6[%c0_117, %c38_118] : memref<2x384xf32, #tpu.memory_space<vmem>>, vector<1x256xf32>
    %341 = vector.broadcast %339 : f32 to vector<1x256xf32>
    %342 = arith.mulf %341, %340 : vector<1x256xf32>
    %343 = arith.addf %338, %342 : vector<1x256xf32>
    %c27 = arith.constant 27 : index
    %344 = memref.load %arg4[%c27] : memref<98xf32, #tpu.memory_space<smem>>
    %c0_119 = arith.constant 0 : index
    %c54 = arith.constant 54 : index
    %345 = vector.load %arg6[%c0_119, %c54] : memref<2x384xf32, #tpu.memory_space<vmem>>, vector<1x256xf32>
    %346 = vector.broadcast %344 : f32 to vector<1x256xf32>
    %347 = arith.mulf %346, %345 : vector<1x256xf32>
    %348 = arith.addf %343, %347 : vector<1x256xf32>
    %c34_120 = arith.constant 34 : index
    %349 = memref.load %arg4[%c34_120] : memref<98xf32, #tpu.memory_space<smem>>
    %c0_121 = arith.constant 0 : index
    %c70 = arith.constant 70 : index
    %350 = vector.load %arg6[%c0_121, %c70] : memref<2x384xf32, #tpu.memory_space<vmem>>, vector<1x256xf32>
    %351 = vector.broadcast %349 : f32 to vector<1x256xf32>
    %352 = arith.mulf %351, %350 : vector<1x256xf32>
    %353 = arith.addf %348, %352 : vector<1x256xf32>
    %c41 = arith.constant 41 : index
    %354 = memref.load %arg4[%c41] : memref<98xf32, #tpu.memory_space<smem>>
    %c0_122 = arith.constant 0 : index
    %c86 = arith.constant 86 : index
    %355 = vector.load %arg6[%c0_122, %c86] : memref<2x384xf32, #tpu.memory_space<vmem>>, vector<1x256xf32>
    %356 = vector.broadcast %354 : f32 to vector<1x256xf32>
    %357 = arith.mulf %356, %355 : vector<1x256xf32>
    %358 = arith.addf %353, %357 : vector<1x256xf32>
    %c48_123 = arith.constant 48 : index
    %359 = memref.load %arg4[%c48_123] : memref<98xf32, #tpu.memory_space<smem>>
    %c0_124 = arith.constant 0 : index
    %c102 = arith.constant 102 : index
    %360 = vector.load %arg6[%c0_124, %c102] : memref<2x384xf32, #tpu.memory_space<vmem>>, vector<1x256xf32>
    %361 = vector.broadcast %359 : f32 to vector<1x256xf32>
    %362 = arith.mulf %361, %360 : vector<1x256xf32>
    %363 = arith.addf %358, %362 : vector<1x256xf32>
    %cst_125 = arith.constant 0.000000e+00 : f32
    %364 = vector.broadcast %cst_125 : f32 to vector<1x256xf32>
    %365 = arith.select %327, %363, %364 : vector<1x256xi1>, vector<1x256xf32>
    %366 = arith.addf %318, %365 : vector<1x256xf32>
    %c0_i32_126 = arith.constant 0 : i32
    %367 = vector.broadcast %c0_i32_126 : i32 to vector<1x256xi32>
    %368 = arith.addi %29, %367 : vector<1x256xi32>
    %c3_i32_127 = arith.constant 3 : i32
    %369 = vector.broadcast %c3_i32_127 : i32 to vector<1x256xi32>
    %370 = arith.cmpi sge, %368, %369 : vector<1x256xi32>
    %c0_i32_128 = arith.constant 0 : i32
    %371 = vector.broadcast %c0_i32_128 : i32 to vector<1x256xi32>
    %372 = arith.addi %29, %371 : vector<1x256xi32>
    %c18_i32_129 = arith.constant 18 : i32
    %373 = vector.broadcast %c18_i32_129 : i32 to vector<1x256xi32>
    %374 = arith.cmpi sle, %372, %373 : vector<1x256xi32>
    %375 = arith.andi %370, %374 : vector<1x256xi1>
    %cst_130 = arith.constant 0.000000e+00 : f32
    %376 = vector.broadcast %cst_130 : f32 to vector<1x256xf32>
    %c49_131 = arith.constant 49 : index
    %377 = memref.load %arg4[%c49_131] : memref<98xf32, #tpu.memory_space<smem>>
    %c1_132 = arith.constant 1 : index
    %c0_133 = arith.constant 0 : index
    %378 = vector.load %arg6[%c1_132, %c0_133] : memref<2x384xf32, #tpu.memory_space<vmem>>, vector<1x256xf32>
    %379 = vector.broadcast %377 : f32 to vector<1x256xf32>
    %380 = arith.mulf %379, %378 : vector<1x256xf32>
    %381 = arith.addf %376, %380 : vector<1x256xf32>
    %c56 = arith.constant 56 : index
    %382 = memref.load %arg4[%c56] : memref<98xf32, #tpu.memory_space<smem>>
    %c1_134 = arith.constant 1 : index
    %c16_135 = arith.constant 16 : index
    %383 = vector.load %arg6[%c1_134, %c16_135] : memref<2x384xf32, #tpu.memory_space<vmem>>, vector<1x256xf32>
    %384 = vector.broadcast %382 : f32 to vector<1x256xf32>
    %385 = arith.mulf %384, %383 : vector<1x256xf32>
    %386 = arith.addf %381, %385 : vector<1x256xf32>
    %c63 = arith.constant 63 : index
    %387 = memref.load %arg4[%c63] : memref<98xf32, #tpu.memory_space<smem>>
    %c1_136 = arith.constant 1 : index
    %c32_137 = arith.constant 32 : index
    %388 = vector.load %arg6[%c1_136, %c32_137] : memref<2x384xf32, #tpu.memory_space<vmem>>, vector<1x256xf32>
    %389 = vector.broadcast %387 : f32 to vector<1x256xf32>
    %390 = arith.mulf %389, %388 : vector<1x256xf32>
    %391 = arith.addf %386, %390 : vector<1x256xf32>
    %c70_138 = arith.constant 70 : index
    %392 = memref.load %arg4[%c70_138] : memref<98xf32, #tpu.memory_space<smem>>
    %c1_139 = arith.constant 1 : index
    %c48_140 = arith.constant 48 : index
    %393 = vector.load %arg6[%c1_139, %c48_140] : memref<2x384xf32, #tpu.memory_space<vmem>>, vector<1x256xf32>
    %394 = vector.broadcast %392 : f32 to vector<1x256xf32>
    %395 = arith.mulf %394, %393 : vector<1x256xf32>
    %396 = arith.addf %391, %395 : vector<1x256xf32>
    %c77 = arith.constant 77 : index
    %397 = memref.load %arg4[%c77] : memref<98xf32, #tpu.memory_space<smem>>
    %c1_141 = arith.constant 1 : index
    %c64_142 = arith.constant 64 : index
    %398 = vector.load %arg6[%c1_141, %c64_142] : memref<2x384xf32, #tpu.memory_space<vmem>>, vector<1x256xf32>
    %399 = vector.broadcast %397 : f32 to vector<1x256xf32>
    %400 = arith.mulf %399, %398 : vector<1x256xf32>
    %401 = arith.addf %396, %400 : vector<1x256xf32>
    %c84_143 = arith.constant 84 : index
    %402 = memref.load %arg4[%c84_143] : memref<98xf32, #tpu.memory_space<smem>>
    %c1_144 = arith.constant 1 : index
    %c80_145 = arith.constant 80 : index
    %403 = vector.load %arg6[%c1_144, %c80_145] : memref<2x384xf32, #tpu.memory_space<vmem>>, vector<1x256xf32>
    %404 = vector.broadcast %402 : f32 to vector<1x256xf32>
    %405 = arith.mulf %404, %403 : vector<1x256xf32>
    %406 = arith.addf %401, %405 : vector<1x256xf32>
    %c91 = arith.constant 91 : index
    %407 = memref.load %arg4[%c91] : memref<98xf32, #tpu.memory_space<smem>>
    %c1_146 = arith.constant 1 : index
    %c96_147 = arith.constant 96 : index
    %408 = vector.load %arg6[%c1_146, %c96_147] : memref<2x384xf32, #tpu.memory_space<vmem>>, vector<1x256xf32>
    %409 = vector.broadcast %407 : f32 to vector<1x256xf32>
    %410 = arith.mulf %409, %408 : vector<1x256xf32>
    %411 = arith.addf %406, %410 : vector<1x256xf32>
    %cst_148 = arith.constant 0.000000e+00 : f32
    %412 = vector.broadcast %cst_148 : f32 to vector<1x256xf32>
    %413 = arith.select %375, %411, %412 : vector<1x256xi1>, vector<1x256xf32>
    %414 = arith.addf %366, %413 : vector<1x256xf32>
    %c1_i32_149 = arith.constant 1 : i32
    %415 = vector.broadcast %c1_i32_149 : i32 to vector<1x256xi32>
    %416 = arith.addi %29, %415 : vector<1x256xi32>
    %c3_i32_150 = arith.constant 3 : i32
    %417 = vector.broadcast %c3_i32_150 : i32 to vector<1x256xi32>
    %418 = arith.cmpi sge, %416, %417 : vector<1x256xi32>
    %c1_i32_151 = arith.constant 1 : i32
    %419 = vector.broadcast %c1_i32_151 : i32 to vector<1x256xi32>
    %420 = arith.addi %29, %419 : vector<1x256xi32>
    %c18_i32_152 = arith.constant 18 : i32
    %421 = vector.broadcast %c18_i32_152 : i32 to vector<1x256xi32>
    %422 = arith.cmpi sle, %420, %421 : vector<1x256xi32>
    %423 = arith.andi %418, %422 : vector<1x256xi1>
    %cst_153 = arith.constant 0.000000e+00 : f32
    %424 = vector.broadcast %cst_153 : f32 to vector<1x256xf32>
    %c50_154 = arith.constant 50 : index
    %425 = memref.load %arg4[%c50_154] : memref<98xf32, #tpu.memory_space<smem>>
    %c1_155 = arith.constant 1 : index
    %c1_156 = arith.constant 1 : index
    %426 = vector.load %arg6[%c1_155, %c1_156] : memref<2x384xf32, #tpu.memory_space<vmem>>, vector<1x256xf32>
    %427 = vector.broadcast %425 : f32 to vector<1x256xf32>
    %428 = arith.mulf %427, %426 : vector<1x256xf32>
    %429 = arith.addf %424, %428 : vector<1x256xf32>
    %c57 = arith.constant 57 : index
    %430 = memref.load %arg4[%c57] : memref<98xf32, #tpu.memory_space<smem>>
    %c1_157 = arith.constant 1 : index
    %c17_158 = arith.constant 17 : index
    %431 = vector.load %arg6[%c1_157, %c17_158] : memref<2x384xf32, #tpu.memory_space<vmem>>, vector<1x256xf32>
    %432 = vector.broadcast %430 : f32 to vector<1x256xf32>
    %433 = arith.mulf %432, %431 : vector<1x256xf32>
    %434 = arith.addf %429, %433 : vector<1x256xf32>
    %c64_159 = arith.constant 64 : index
    %435 = memref.load %arg4[%c64_159] : memref<98xf32, #tpu.memory_space<smem>>
    %c1_160 = arith.constant 1 : index
    %c33_161 = arith.constant 33 : index
    %436 = vector.load %arg6[%c1_160, %c33_161] : memref<2x384xf32, #tpu.memory_space<vmem>>, vector<1x256xf32>
    %437 = vector.broadcast %435 : f32 to vector<1x256xf32>
    %438 = arith.mulf %437, %436 : vector<1x256xf32>
    %439 = arith.addf %434, %438 : vector<1x256xf32>
    %c71 = arith.constant 71 : index
    %440 = memref.load %arg4[%c71] : memref<98xf32, #tpu.memory_space<smem>>
    %c1_162 = arith.constant 1 : index
    %c49_163 = arith.constant 49 : index
    %441 = vector.load %arg6[%c1_162, %c49_163] : memref<2x384xf32, #tpu.memory_space<vmem>>, vector<1x256xf32>
    %442 = vector.broadcast %440 : f32 to vector<1x256xf32>
    %443 = arith.mulf %442, %441 : vector<1x256xf32>
    %444 = arith.addf %439, %443 : vector<1x256xf32>
    %c78 = arith.constant 78 : index
    %445 = memref.load %arg4[%c78] : memref<98xf32, #tpu.memory_space<smem>>
    %c1_164 = arith.constant 1 : index
    %c65_165 = arith.constant 65 : index
    %446 = vector.load %arg6[%c1_164, %c65_165] : memref<2x384xf32, #tpu.memory_space<vmem>>, vector<1x256xf32>
    %447 = vector.broadcast %445 : f32 to vector<1x256xf32>
    %448 = arith.mulf %447, %446 : vector<1x256xf32>
    %449 = arith.addf %444, %448 : vector<1x256xf32>
    %c85_166 = arith.constant 85 : index
    %450 = memref.load %arg4[%c85_166] : memref<98xf32, #tpu.memory_space<smem>>
    %c1_167 = arith.constant 1 : index
    %c81_168 = arith.constant 81 : index
    %451 = vector.load %arg6[%c1_167, %c81_168] : memref<2x384xf32, #tpu.memory_space<vmem>>, vector<1x256xf32>
    %452 = vector.broadcast %450 : f32 to vector<1x256xf32>
    %453 = arith.mulf %452, %451 : vector<1x256xf32>
    %454 = arith.addf %449, %453 : vector<1x256xf32>
    %c92 = arith.constant 92 : index
    %455 = memref.load %arg4[%c92] : memref<98xf32, #tpu.memory_space<smem>>
    %c1_169 = arith.constant 1 : index
    %c97_170 = arith.constant 97 : index
    %456 = vector.load %arg6[%c1_169, %c97_170] : memref<2x384xf32, #tpu.memory_space<vmem>>, vector<1x256xf32>
    %457 = vector.broadcast %455 : f32 to vector<1x256xf32>
    %458 = arith.mulf %457, %456 : vector<1x256xf32>
    %459 = arith.addf %454, %458 : vector<1x256xf32>
    %cst_171 = arith.constant 0.000000e+00 : f32
    %460 = vector.broadcast %cst_171 : f32 to vector<1x256xf32>
    %461 = arith.select %423, %459, %460 : vector<1x256xi1>, vector<1x256xf32>
    %462 = arith.addf %414, %461 : vector<1x256xf32>
    %c2_i32_172 = arith.constant 2 : i32
    %463 = vector.broadcast %c2_i32_172 : i32 to vector<1x256xi32>
    %464 = arith.addi %29, %463 : vector<1x256xi32>
    %c3_i32_173 = arith.constant 3 : i32
    %465 = vector.broadcast %c3_i32_173 : i32 to vector<1x256xi32>
    %466 = arith.cmpi sge, %464, %465 : vector<1x256xi32>
    %c2_i32_174 = arith.constant 2 : i32
    %467 = vector.broadcast %c2_i32_174 : i32 to vector<1x256xi32>
    %468 = arith.addi %29, %467 : vector<1x256xi32>
    %c18_i32_175 = arith.constant 18 : i32
    %469 = vector.broadcast %c18_i32_175 : i32 to vector<1x256xi32>
    %470 = arith.cmpi sle, %468, %469 : vector<1x256xi32>
    %471 = arith.andi %466, %470 : vector<1x256xi1>
    %cst_176 = arith.constant 0.000000e+00 : f32
    %472 = vector.broadcast %cst_176 : f32 to vector<1x256xf32>
    %c51_177 = arith.constant 51 : index
    %473 = memref.load %arg4[%c51_177] : memref<98xf32, #tpu.memory_space<smem>>
    %c1_178 = arith.constant 1 : index
    %c2_179 = arith.constant 2 : index
    %474 = vector.load %arg6[%c1_178, %c2_179] : memref<2x384xf32, #tpu.memory_space<vmem>>, vector<1x256xf32>
    %475 = vector.broadcast %473 : f32 to vector<1x256xf32>
    %476 = arith.mulf %475, %474 : vector<1x256xf32>
    %477 = arith.addf %472, %476 : vector<1x256xf32>
    %c58 = arith.constant 58 : index
    %478 = memref.load %arg4[%c58] : memref<98xf32, #tpu.memory_space<smem>>
    %c1_180 = arith.constant 1 : index
    %c18_181 = arith.constant 18 : index
    %479 = vector.load %arg6[%c1_180, %c18_181] : memref<2x384xf32, #tpu.memory_space<vmem>>, vector<1x256xf32>
    %480 = vector.broadcast %478 : f32 to vector<1x256xf32>
    %481 = arith.mulf %480, %479 : vector<1x256xf32>
    %482 = arith.addf %477, %481 : vector<1x256xf32>
    %c65_182 = arith.constant 65 : index
    %483 = memref.load %arg4[%c65_182] : memref<98xf32, #tpu.memory_space<smem>>
    %c1_183 = arith.constant 1 : index
    %c34_184 = arith.constant 34 : index
    %484 = vector.load %arg6[%c1_183, %c34_184] : memref<2x384xf32, #tpu.memory_space<vmem>>, vector<1x256xf32>
    %485 = vector.broadcast %483 : f32 to vector<1x256xf32>
    %486 = arith.mulf %485, %484 : vector<1x256xf32>
    %487 = arith.addf %482, %486 : vector<1x256xf32>
    %c72 = arith.constant 72 : index
    %488 = memref.load %arg4[%c72] : memref<98xf32, #tpu.memory_space<smem>>
    %c1_185 = arith.constant 1 : index
    %c50_186 = arith.constant 50 : index
    %489 = vector.load %arg6[%c1_185, %c50_186] : memref<2x384xf32, #tpu.memory_space<vmem>>, vector<1x256xf32>
    %490 = vector.broadcast %488 : f32 to vector<1x256xf32>
    %491 = arith.mulf %490, %489 : vector<1x256xf32>
    %492 = arith.addf %487, %491 : vector<1x256xf32>
    %c79 = arith.constant 79 : index
    %493 = memref.load %arg4[%c79] : memref<98xf32, #tpu.memory_space<smem>>
    %c1_187 = arith.constant 1 : index
    %c66_188 = arith.constant 66 : index
    %494 = vector.load %arg6[%c1_187, %c66_188] : memref<2x384xf32, #tpu.memory_space<vmem>>, vector<1x256xf32>
    %495 = vector.broadcast %493 : f32 to vector<1x256xf32>
    %496 = arith.mulf %495, %494 : vector<1x256xf32>
    %497 = arith.addf %492, %496 : vector<1x256xf32>
    %c86_189 = arith.constant 86 : index
    %498 = memref.load %arg4[%c86_189] : memref<98xf32, #tpu.memory_space<smem>>
    %c1_190 = arith.constant 1 : index
    %c82_191 = arith.constant 82 : index
    %499 = vector.load %arg6[%c1_190, %c82_191] : memref<2x384xf32, #tpu.memory_space<vmem>>, vector<1x256xf32>
    %500 = vector.broadcast %498 : f32 to vector<1x256xf32>
    %501 = arith.mulf %500, %499 : vector<1x256xf32>
    %502 = arith.addf %497, %501 : vector<1x256xf32>
    %c93 = arith.constant 93 : index
    %503 = memref.load %arg4[%c93] : memref<98xf32, #tpu.memory_space<smem>>
    %c1_192 = arith.constant 1 : index
    %c98_193 = arith.constant 98 : index
    %504 = vector.load %arg6[%c1_192, %c98_193] : memref<2x384xf32, #tpu.memory_space<vmem>>, vector<1x256xf32>
    %505 = vector.broadcast %503 : f32 to vector<1x256xf32>
    %506 = arith.mulf %505, %504 : vector<1x256xf32>
    %507 = arith.addf %502, %506 : vector<1x256xf32>
    %cst_194 = arith.constant 0.000000e+00 : f32
    %508 = vector.broadcast %cst_194 : f32 to vector<1x256xf32>
    %509 = arith.select %471, %507, %508 : vector<1x256xi1>, vector<1x256xf32>
    %510 = arith.addf %462, %509 : vector<1x256xf32>
    %c3_i32_195 = arith.constant 3 : i32
    %511 = vector.broadcast %c3_i32_195 : i32 to vector<1x256xi32>
    %512 = arith.addi %29, %511 : vector<1x256xi32>
    %c3_i32_196 = arith.constant 3 : i32
    %513 = vector.broadcast %c3_i32_196 : i32 to vector<1x256xi32>
    %514 = arith.cmpi sge, %512, %513 : vector<1x256xi32>
    %c3_i32_197 = arith.constant 3 : i32
    %515 = vector.broadcast %c3_i32_197 : i32 to vector<1x256xi32>
    %516 = arith.addi %29, %515 : vector<1x256xi32>
    %c18_i32_198 = arith.constant 18 : i32
    %517 = vector.broadcast %c18_i32_198 : i32 to vector<1x256xi32>
    %518 = arith.cmpi sle, %516, %517 : vector<1x256xi32>
    %519 = arith.andi %514, %518 : vector<1x256xi1>
    %cst_199 = arith.constant 0.000000e+00 : f32
    %520 = vector.broadcast %cst_199 : f32 to vector<1x256xf32>
    %c52_200 = arith.constant 52 : index
    %521 = memref.load %arg4[%c52_200] : memref<98xf32, #tpu.memory_space<smem>>
    %c1_201 = arith.constant 1 : index
    %c3_202 = arith.constant 3 : index
    %522 = vector.load %arg6[%c1_201, %c3_202] : memref<2x384xf32, #tpu.memory_space<vmem>>, vector<1x256xf32>
    %523 = vector.broadcast %521 : f32 to vector<1x256xf32>
    %524 = arith.mulf %523, %522 : vector<1x256xf32>
    %525 = arith.addf %520, %524 : vector<1x256xf32>
    %c59 = arith.constant 59 : index
    %526 = memref.load %arg4[%c59] : memref<98xf32, #tpu.memory_space<smem>>
    %c1_203 = arith.constant 1 : index
    %c19_204 = arith.constant 19 : index
    %527 = vector.load %arg6[%c1_203, %c19_204] : memref<2x384xf32, #tpu.memory_space<vmem>>, vector<1x256xf32>
    %528 = vector.broadcast %526 : f32 to vector<1x256xf32>
    %529 = arith.mulf %528, %527 : vector<1x256xf32>
    %530 = arith.addf %525, %529 : vector<1x256xf32>
    %c66_205 = arith.constant 66 : index
    %531 = memref.load %arg4[%c66_205] : memref<98xf32, #tpu.memory_space<smem>>
    %c1_206 = arith.constant 1 : index
    %c35_207 = arith.constant 35 : index
    %532 = vector.load %arg6[%c1_206, %c35_207] : memref<2x384xf32, #tpu.memory_space<vmem>>, vector<1x256xf32>
    %533 = vector.broadcast %531 : f32 to vector<1x256xf32>
    %534 = arith.mulf %533, %532 : vector<1x256xf32>
    %535 = arith.addf %530, %534 : vector<1x256xf32>
    %c73 = arith.constant 73 : index
    %536 = memref.load %arg4[%c73] : memref<98xf32, #tpu.memory_space<smem>>
    %c1_208 = arith.constant 1 : index
    %c51_209 = arith.constant 51 : index
    %537 = vector.load %arg6[%c1_208, %c51_209] : memref<2x384xf32, #tpu.memory_space<vmem>>, vector<1x256xf32>
    %538 = vector.broadcast %536 : f32 to vector<1x256xf32>
    %539 = arith.mulf %538, %537 : vector<1x256xf32>
    %540 = arith.addf %535, %539 : vector<1x256xf32>
    %c80_210 = arith.constant 80 : index
    %541 = memref.load %arg4[%c80_210] : memref<98xf32, #tpu.memory_space<smem>>
    %c1_211 = arith.constant 1 : index
    %c67_212 = arith.constant 67 : index
    %542 = vector.load %arg6[%c1_211, %c67_212] : memref<2x384xf32, #tpu.memory_space<vmem>>, vector<1x256xf32>
    %543 = vector.broadcast %541 : f32 to vector<1x256xf32>
    %544 = arith.mulf %543, %542 : vector<1x256xf32>
    %545 = arith.addf %540, %544 : vector<1x256xf32>
    %c87 = arith.constant 87 : index
    %546 = memref.load %arg4[%c87] : memref<98xf32, #tpu.memory_space<smem>>
    %c1_213 = arith.constant 1 : index
    %c83_214 = arith.constant 83 : index
    %547 = vector.load %arg6[%c1_213, %c83_214] : memref<2x384xf32, #tpu.memory_space<vmem>>, vector<1x256xf32>
    %548 = vector.broadcast %546 : f32 to vector<1x256xf32>
    %549 = arith.mulf %548, %547 : vector<1x256xf32>
    %550 = arith.addf %545, %549 : vector<1x256xf32>
    %c94 = arith.constant 94 : index
    %551 = memref.load %arg4[%c94] : memref<98xf32, #tpu.memory_space<smem>>
    %c1_215 = arith.constant 1 : index
    %c99_216 = arith.constant 99 : index
    %552 = vector.load %arg6[%c1_215, %c99_216] : memref<2x384xf32, #tpu.memory_space<vmem>>, vector<1x256xf32>
    %553 = vector.broadcast %551 : f32 to vector<1x256xf32>
    %554 = arith.mulf %553, %552 : vector<1x256xf32>
    %555 = arith.addf %550, %554 : vector<1x256xf32>
    %cst_217 = arith.constant 0.000000e+00 : f32
    %556 = vector.broadcast %cst_217 : f32 to vector<1x256xf32>
    %557 = arith.select %519, %555, %556 : vector<1x256xi1>, vector<1x256xf32>
    %558 = arith.addf %510, %557 : vector<1x256xf32>
    %c4_i32_218 = arith.constant 4 : i32
    %559 = vector.broadcast %c4_i32_218 : i32 to vector<1x256xi32>
    %560 = arith.addi %29, %559 : vector<1x256xi32>
    %c3_i32_219 = arith.constant 3 : i32
    %561 = vector.broadcast %c3_i32_219 : i32 to vector<1x256xi32>
    %562 = arith.cmpi sge, %560, %561 : vector<1x256xi32>
    %c4_i32_220 = arith.constant 4 : i32
    %563 = vector.broadcast %c4_i32_220 : i32 to vector<1x256xi32>
    %564 = arith.addi %29, %563 : vector<1x256xi32>
    %c18_i32_221 = arith.constant 18 : i32
    %565 = vector.broadcast %c18_i32_221 : i32 to vector<1x256xi32>
    %566 = arith.cmpi sle, %564, %565 : vector<1x256xi32>
    %567 = arith.andi %562, %566 : vector<1x256xi1>
    %cst_222 = arith.constant 0.000000e+00 : f32
    %568 = vector.broadcast %cst_222 : f32 to vector<1x256xf32>
    %c53_223 = arith.constant 53 : index
    %569 = memref.load %arg4[%c53_223] : memref<98xf32, #tpu.memory_space<smem>>
    %c1_224 = arith.constant 1 : index
    %c4_225 = arith.constant 4 : index
    %570 = vector.load %arg6[%c1_224, %c4_225] : memref<2x384xf32, #tpu.memory_space<vmem>>, vector<1x256xf32>
    %571 = vector.broadcast %569 : f32 to vector<1x256xf32>
    %572 = arith.mulf %571, %570 : vector<1x256xf32>
    %573 = arith.addf %568, %572 : vector<1x256xf32>
    %c60 = arith.constant 60 : index
    %574 = memref.load %arg4[%c60] : memref<98xf32, #tpu.memory_space<smem>>
    %c1_226 = arith.constant 1 : index
    %c20_227 = arith.constant 20 : index
    %575 = vector.load %arg6[%c1_226, %c20_227] : memref<2x384xf32, #tpu.memory_space<vmem>>, vector<1x256xf32>
    %576 = vector.broadcast %574 : f32 to vector<1x256xf32>
    %577 = arith.mulf %576, %575 : vector<1x256xf32>
    %578 = arith.addf %573, %577 : vector<1x256xf32>
    %c67_228 = arith.constant 67 : index
    %579 = memref.load %arg4[%c67_228] : memref<98xf32, #tpu.memory_space<smem>>
    %c1_229 = arith.constant 1 : index
    %c36_230 = arith.constant 36 : index
    %580 = vector.load %arg6[%c1_229, %c36_230] : memref<2x384xf32, #tpu.memory_space<vmem>>, vector<1x256xf32>
    %581 = vector.broadcast %579 : f32 to vector<1x256xf32>
    %582 = arith.mulf %581, %580 : vector<1x256xf32>
    %583 = arith.addf %578, %582 : vector<1x256xf32>
    %c74 = arith.constant 74 : index
    %584 = memref.load %arg4[%c74] : memref<98xf32, #tpu.memory_space<smem>>
    %c1_231 = arith.constant 1 : index
    %c52_232 = arith.constant 52 : index
    %585 = vector.load %arg6[%c1_231, %c52_232] : memref<2x384xf32, #tpu.memory_space<vmem>>, vector<1x256xf32>
    %586 = vector.broadcast %584 : f32 to vector<1x256xf32>
    %587 = arith.mulf %586, %585 : vector<1x256xf32>
    %588 = arith.addf %583, %587 : vector<1x256xf32>
    %c81_233 = arith.constant 81 : index
    %589 = memref.load %arg4[%c81_233] : memref<98xf32, #tpu.memory_space<smem>>
    %c1_234 = arith.constant 1 : index
    %c68_235 = arith.constant 68 : index
    %590 = vector.load %arg6[%c1_234, %c68_235] : memref<2x384xf32, #tpu.memory_space<vmem>>, vector<1x256xf32>
    %591 = vector.broadcast %589 : f32 to vector<1x256xf32>
    %592 = arith.mulf %591, %590 : vector<1x256xf32>
    %593 = arith.addf %588, %592 : vector<1x256xf32>
    %c88 = arith.constant 88 : index
    %594 = memref.load %arg4[%c88] : memref<98xf32, #tpu.memory_space<smem>>
    %c1_236 = arith.constant 1 : index
    %c84_237 = arith.constant 84 : index
    %595 = vector.load %arg6[%c1_236, %c84_237] : memref<2x384xf32, #tpu.memory_space<vmem>>, vector<1x256xf32>
    %596 = vector.broadcast %594 : f32 to vector<1x256xf32>
    %597 = arith.mulf %596, %595 : vector<1x256xf32>
    %598 = arith.addf %593, %597 : vector<1x256xf32>
    %c95 = arith.constant 95 : index
    %599 = memref.load %arg4[%c95] : memref<98xf32, #tpu.memory_space<smem>>
    %c1_238 = arith.constant 1 : index
    %c100_239 = arith.constant 100 : index
    %600 = vector.load %arg6[%c1_238, %c100_239] : memref<2x384xf32, #tpu.memory_space<vmem>>, vector<1x256xf32>
    %601 = vector.broadcast %599 : f32 to vector<1x256xf32>
    %602 = arith.mulf %601, %600 : vector<1x256xf32>
    %603 = arith.addf %598, %602 : vector<1x256xf32>
    %cst_240 = arith.constant 0.000000e+00 : f32
    %604 = vector.broadcast %cst_240 : f32 to vector<1x256xf32>
    %605 = arith.select %567, %603, %604 : vector<1x256xi1>, vector<1x256xf32>
    %606 = arith.addf %558, %605 : vector<1x256xf32>
    %c5_i32_241 = arith.constant 5 : i32
    %607 = vector.broadcast %c5_i32_241 : i32 to vector<1x256xi32>
    %608 = arith.addi %29, %607 : vector<1x256xi32>
    %c3_i32_242 = arith.constant 3 : i32
    %609 = vector.broadcast %c3_i32_242 : i32 to vector<1x256xi32>
    %610 = arith.cmpi sge, %608, %609 : vector<1x256xi32>
    %c5_i32_243 = arith.constant 5 : i32
    %611 = vector.broadcast %c5_i32_243 : i32 to vector<1x256xi32>
    %612 = arith.addi %29, %611 : vector<1x256xi32>
    %c18_i32_244 = arith.constant 18 : i32
    %613 = vector.broadcast %c18_i32_244 : i32 to vector<1x256xi32>
    %614 = arith.cmpi sle, %612, %613 : vector<1x256xi32>
    %615 = arith.andi %610, %614 : vector<1x256xi1>
    %cst_245 = arith.constant 0.000000e+00 : f32
    %616 = vector.broadcast %cst_245 : f32 to vector<1x256xf32>
    %c54_246 = arith.constant 54 : index
    %617 = memref.load %arg4[%c54_246] : memref<98xf32, #tpu.memory_space<smem>>
    %c1_247 = arith.constant 1 : index
    %c5_248 = arith.constant 5 : index
    %618 = vector.load %arg6[%c1_247, %c5_248] : memref<2x384xf32, #tpu.memory_space<vmem>>, vector<1x256xf32>
    %619 = vector.broadcast %617 : f32 to vector<1x256xf32>
    %620 = arith.mulf %619, %618 : vector<1x256xf32>
    %621 = arith.addf %616, %620 : vector<1x256xf32>
    %c61 = arith.constant 61 : index
    %622 = memref.load %arg4[%c61] : memref<98xf32, #tpu.memory_space<smem>>
    %c1_249 = arith.constant 1 : index
    %c21_250 = arith.constant 21 : index
    %623 = vector.load %arg6[%c1_249, %c21_250] : memref<2x384xf32, #tpu.memory_space<vmem>>, vector<1x256xf32>
    %624 = vector.broadcast %622 : f32 to vector<1x256xf32>
    %625 = arith.mulf %624, %623 : vector<1x256xf32>
    %626 = arith.addf %621, %625 : vector<1x256xf32>
    %c68_251 = arith.constant 68 : index
    %627 = memref.load %arg4[%c68_251] : memref<98xf32, #tpu.memory_space<smem>>
    %c1_252 = arith.constant 1 : index
    %c37_253 = arith.constant 37 : index
    %628 = vector.load %arg6[%c1_252, %c37_253] : memref<2x384xf32, #tpu.memory_space<vmem>>, vector<1x256xf32>
    %629 = vector.broadcast %627 : f32 to vector<1x256xf32>
    %630 = arith.mulf %629, %628 : vector<1x256xf32>
    %631 = arith.addf %626, %630 : vector<1x256xf32>
    %c75 = arith.constant 75 : index
    %632 = memref.load %arg4[%c75] : memref<98xf32, #tpu.memory_space<smem>>
    %c1_254 = arith.constant 1 : index
    %c53_255 = arith.constant 53 : index
    %633 = vector.load %arg6[%c1_254, %c53_255] : memref<2x384xf32, #tpu.memory_space<vmem>>, vector<1x256xf32>
    %634 = vector.broadcast %632 : f32 to vector<1x256xf32>
    %635 = arith.mulf %634, %633 : vector<1x256xf32>
    %636 = arith.addf %631, %635 : vector<1x256xf32>
    %c82_256 = arith.constant 82 : index
    %637 = memref.load %arg4[%c82_256] : memref<98xf32, #tpu.memory_space<smem>>
    %c1_257 = arith.constant 1 : index
    %c69_258 = arith.constant 69 : index
    %638 = vector.load %arg6[%c1_257, %c69_258] : memref<2x384xf32, #tpu.memory_space<vmem>>, vector<1x256xf32>
    %639 = vector.broadcast %637 : f32 to vector<1x256xf32>
    %640 = arith.mulf %639, %638 : vector<1x256xf32>
    %641 = arith.addf %636, %640 : vector<1x256xf32>
    %c89 = arith.constant 89 : index
    %642 = memref.load %arg4[%c89] : memref<98xf32, #tpu.memory_space<smem>>
    %c1_259 = arith.constant 1 : index
    %c85_260 = arith.constant 85 : index
    %643 = vector.load %arg6[%c1_259, %c85_260] : memref<2x384xf32, #tpu.memory_space<vmem>>, vector<1x256xf32>
    %644 = vector.broadcast %642 : f32 to vector<1x256xf32>
    %645 = arith.mulf %644, %643 : vector<1x256xf32>
    %646 = arith.addf %641, %645 : vector<1x256xf32>
    %c96_261 = arith.constant 96 : index
    %647 = memref.load %arg4[%c96_261] : memref<98xf32, #tpu.memory_space<smem>>
    %c1_262 = arith.constant 1 : index
    %c101_263 = arith.constant 101 : index
    %648 = vector.load %arg6[%c1_262, %c101_263] : memref<2x384xf32, #tpu.memory_space<vmem>>, vector<1x256xf32>
    %649 = vector.broadcast %647 : f32 to vector<1x256xf32>
    %650 = arith.mulf %649, %648 : vector<1x256xf32>
    %651 = arith.addf %646, %650 : vector<1x256xf32>
    %cst_264 = arith.constant 0.000000e+00 : f32
    %652 = vector.broadcast %cst_264 : f32 to vector<1x256xf32>
    %653 = arith.select %615, %651, %652 : vector<1x256xi1>, vector<1x256xf32>
    %654 = arith.addf %606, %653 : vector<1x256xf32>
    %c6_i32_265 = arith.constant 6 : i32
    %655 = vector.broadcast %c6_i32_265 : i32 to vector<1x256xi32>
    %656 = arith.addi %29, %655 : vector<1x256xi32>
    %c3_i32_266 = arith.constant 3 : i32
    %657 = vector.broadcast %c3_i32_266 : i32 to vector<1x256xi32>
    %658 = arith.cmpi sge, %656, %657 : vector<1x256xi32>
    %c6_i32_267 = arith.constant 6 : i32
    %659 = vector.broadcast %c6_i32_267 : i32 to vector<1x256xi32>
    %660 = arith.addi %29, %659 : vector<1x256xi32>
    %c18_i32_268 = arith.constant 18 : i32
    %661 = vector.broadcast %c18_i32_268 : i32 to vector<1x256xi32>
    %662 = arith.cmpi sle, %660, %661 : vector<1x256xi32>
    %663 = arith.andi %658, %662 : vector<1x256xi1>
    %cst_269 = arith.constant 0.000000e+00 : f32
    %664 = vector.broadcast %cst_269 : f32 to vector<1x256xf32>
    %c55 = arith.constant 55 : index
    %665 = memref.load %arg4[%c55] : memref<98xf32, #tpu.memory_space<smem>>
    %c1_270 = arith.constant 1 : index
    %c6_271 = arith.constant 6 : index
    %666 = vector.load %arg6[%c1_270, %c6_271] : memref<2x384xf32, #tpu.memory_space<vmem>>, vector<1x256xf32>
    %667 = vector.broadcast %665 : f32 to vector<1x256xf32>
    %668 = arith.mulf %667, %666 : vector<1x256xf32>
    %669 = arith.addf %664, %668 : vector<1x256xf32>
    %c62 = arith.constant 62 : index
    %670 = memref.load %arg4[%c62] : memref<98xf32, #tpu.memory_space<smem>>
    %c1_272 = arith.constant 1 : index
    %c22_273 = arith.constant 22 : index
    %671 = vector.load %arg6[%c1_272, %c22_273] : memref<2x384xf32, #tpu.memory_space<vmem>>, vector<1x256xf32>
    %672 = vector.broadcast %670 : f32 to vector<1x256xf32>
    %673 = arith.mulf %672, %671 : vector<1x256xf32>
    %674 = arith.addf %669, %673 : vector<1x256xf32>
    %c69_274 = arith.constant 69 : index
    %675 = memref.load %arg4[%c69_274] : memref<98xf32, #tpu.memory_space<smem>>
    %c1_275 = arith.constant 1 : index
    %c38_276 = arith.constant 38 : index
    %676 = vector.load %arg6[%c1_275, %c38_276] : memref<2x384xf32, #tpu.memory_space<vmem>>, vector<1x256xf32>
    %677 = vector.broadcast %675 : f32 to vector<1x256xf32>
    %678 = arith.mulf %677, %676 : vector<1x256xf32>
    %679 = arith.addf %674, %678 : vector<1x256xf32>
    %c76 = arith.constant 76 : index
    %680 = memref.load %arg4[%c76] : memref<98xf32, #tpu.memory_space<smem>>
    %c1_277 = arith.constant 1 : index
    %c54_278 = arith.constant 54 : index
    %681 = vector.load %arg6[%c1_277, %c54_278] : memref<2x384xf32, #tpu.memory_space<vmem>>, vector<1x256xf32>
    %682 = vector.broadcast %680 : f32 to vector<1x256xf32>
    %683 = arith.mulf %682, %681 : vector<1x256xf32>
    %684 = arith.addf %679, %683 : vector<1x256xf32>
    %c83_279 = arith.constant 83 : index
    %685 = memref.load %arg4[%c83_279] : memref<98xf32, #tpu.memory_space<smem>>
    %c1_280 = arith.constant 1 : index
    %c70_281 = arith.constant 70 : index
    %686 = vector.load %arg6[%c1_280, %c70_281] : memref<2x384xf32, #tpu.memory_space<vmem>>, vector<1x256xf32>
    %687 = vector.broadcast %685 : f32 to vector<1x256xf32>
    %688 = arith.mulf %687, %686 : vector<1x256xf32>
    %689 = arith.addf %684, %688 : vector<1x256xf32>
    %c90 = arith.constant 90 : index
    %690 = memref.load %arg4[%c90] : memref<98xf32, #tpu.memory_space<smem>>
    %c1_282 = arith.constant 1 : index
    %c86_283 = arith.constant 86 : index
    %691 = vector.load %arg6[%c1_282, %c86_283] : memref<2x384xf32, #tpu.memory_space<vmem>>, vector<1x256xf32>
    %692 = vector.broadcast %690 : f32 to vector<1x256xf32>
    %693 = arith.mulf %692, %691 : vector<1x256xf32>
    %694 = arith.addf %689, %693 : vector<1x256xf32>
    %c97_284 = arith.constant 97 : index
    %695 = memref.load %arg4[%c97_284] : memref<98xf32, #tpu.memory_space<smem>>
    %c1_285 = arith.constant 1 : index
    %c102_286 = arith.constant 102 : index
    %696 = vector.load %arg6[%c1_285, %c102_286] : memref<2x384xf32, #tpu.memory_space<vmem>>, vector<1x256xf32>
    %697 = vector.broadcast %695 : f32 to vector<1x256xf32>
    %698 = arith.mulf %697, %696 : vector<1x256xf32>
    %699 = arith.addf %694, %698 : vector<1x256xf32>
    %cst_287 = arith.constant 0.000000e+00 : f32
    %700 = vector.broadcast %cst_287 : f32 to vector<1x256xf32>
    %701 = arith.select %663, %699, %700 : vector<1x256xi1>, vector<1x256xf32>
    %702 = arith.addf %654, %701 : vector<1x256xf32>
    %703 = arith.negf %702 : vector<1x256xf32>
    %704 = math.exp %703 : vector<1x256xf32>
    %cst_288 = arith.constant 1.000000e+00 : f32
    %705 = vector.broadcast %cst_288 : f32 to vector<1x256xf32>
    %706 = arith.addf %705, %704 : vector<1x256xf32>
    %707 = arith.divf %705, %706 : vector<1x256xf32>
    %708 = vector.broadcast %707 : vector<1x256xf32> to vector<4x256xf32>
    %709 = arith.mulf %16, %708 : vector<4x256xf32>
    %c0_289 = arith.constant 0 : index
    %c0_290 = arith.constant 0 : index
    %c0_291 = arith.constant 0 : index
    %710 = vector.load %arg5[%c0_289, %c0_290, %c0_291] : memref<1x4x256xf32, #tpu.memory_space<vmem>>, vector<1x4x256xf32>
    %711 = vector.shape_cast %710 : vector<1x4x256xf32> to vector<4x256xf32>
    %712 = vector.shape_cast %709 : vector<4x256xf32> to vector<1x4x256xf32>
    tpu.vector_store %arg5[%c0_289, %c0_290, %c0_291], %712 {strides = array<i32>} : memref<1x4x256xf32, #tpu.memory_space<vmem>>, vector<1x4x256xf32>,
    return
  }
  func.func @transform_0(%arg0: i32) -> (i32, i32, i32) {
    %c0_i32 = arith.constant 0 : i32
    %c0_i32_0 = arith.constant 0 : i32
    %c0_i32_1 = arith.constant 0 : i32
    return %arg0, %c0_i32, %c0_i32_0 : i32, i32, i32
  }
  func.func @transform_1(%arg0: i32) -> (i32, i32) {
    %c0_i32 = arith.constant 0 : i32
    %c0_i32_0 = arith.constant 0 : i32
    %c0_i32_1 = arith.constant 0 : i32
    return %c0_i32, %c0_i32_0 : i32, i32
  }
  func.func @transform_2(%arg0: i32) -> (i32, i32) {
    %c0_i32 = arith.constant 0 : i32
    %c0_i32_0 = arith.constant 0 : i32
    %c0_i32_1 = arith.constant 0 : i32
    return %c0_i32, %c0_i32_0 : i32, i32
  }
  func.func @transform_3(%arg0: i32) -> i32 {
    %c0_i32 = arith.constant 0 : i32
    %c0_i32_0 = arith.constant 0 : i32
    return %c0_i32 : i32
  }
  func.func @transform_4(%arg0: i32) -> (i32, i32, i32) {
    %c0_i32 = arith.constant 0 : i32
    %c0_i32_0 = arith.constant 0 : i32
    %c0_i32_1 = arith.constant 0 : i32
    return %arg0, %c0_i32, %c0_i32_0 : i32, i32, i32
  }
}

</mosaic_0001>

<llo_original>
// kernel: tpu_custom_call.1
$region0: #{tpu_custom_call.1}
  #allocation0 [shape = 'u32[]', space=smem, size = 0x4, offset = 0x4, fixed_abs, tag = 'smem constant byte address 0x4 - core index']
  #allocation1 [shape = 'u32[72,128]{1,0:T(1,128)}', space=vmem, size = 0x9000, scoped, tag = 'internal scratch']
  #allocation2 [shape = 'f32[2,384]{1,0:T(2,128)}', space=vmem, size = 0xc00, scoped, tag = 'scratch operand']
  %s0 = inlined_call_operand.hbm [shape: f32[2,4,256], index: 0, kind: input, shape index: {}]
  %s1 = inlined_call_operand.vmem [shape: f32[4,4], index: 1, kind: input, shape index: {}]
  %s2 = inlined_call_operand.vmem [shape: f32[4,1], index: 2, kind: input, shape index: {}]
  %s3 = inlined_call_operand.vmem [shape: f32[98], index: 3, kind: input, shape index: {}]
  %s4 = inlined_call_operand.hbm [shape: f32[2,4,256], index: 4, kind: output, shape index: {}]
  %s5 = sld [smem:[#allocation0]]
  $region57: #{tpu_custom_call.1} parent=0
    _
  %s7 = ssub.s32 1, %s5
  %s8 = scalar_select 0, %s7, %s5
  $region1: #{tpu_custom_call.1} parent=0
    #allocation3 [shape = 'u8[8192]{0}', space=vmem, size = 0x2000, scoped, tag = 'input window, operand 0']
    #allocation4 [shape = 's32[2]{0}', space=sflag, size = 0x8, scoped, tag = 'scoped memory for tpu_custom_call.1']
    #allocation5 [shape = 's32[2]{0}', space=sflag, size = 0x8, scoped, tag = 'scoped memory for tpu_custom_call.1']
    #allocation6 [shape = 's32[2]{0}', space=sflag, size = 0x8, scoped, tag = 'scoped memory for tpu_custom_call.1']
    #allocation7 [shape = 'u8[512]{0}', space=smem, size = 0x200, scoped, tag = 'input window, operand 3, single buffered']
    #allocation8 [shape = 'u8[8192]{0}', space=vmem, size = 0x2000, scoped, tag = 'output window, operand 0']
    %9 = vsyncpa [#allocation4], 0
    %s10 = scalar_lea.sflag [#allocation4], 1
    %11 = vsyncpa %s10, 0
    %12 = vsyncpa [#allocation6], 0
    %13 = vsyncpa [#allocation5], 0
    %s14 = scalar_lea.sflag [#allocation5], 1
    %15 = vsyncpa %s14, 0
    loop: start=0, step=1, limit=4
    $region2: #{tpu_custom_call.1} parent=1 // loop_pre_header
      _
    $region3: #{tpu_custom_call.1} parent=1 // loop_header
      %s17 = sphi 0, %s21
      %p18 = scmp.ge.s32.totalorder %s17, 4
      %s27 = sphi 0, %s29
      %s30 = sphi 0, %s27
      %s31 = sphi 0, %s30
      %s47 = sphi 0, %s31
      %s51 = sphi 0, %s51
      %s53 = sphi 0, %s51
      %s54 = sphi 0, %s53
      %s68 = sphi 0, %s54
      %s72 = sphi 0, %s72
      %s74 = sphi 0, %s72
      %s75 = sphi 0, %s74
      %s89 = sphi 0, %s75
      %s93 = sphi 0, %s93
      %s95 = sphi 0, %s93
      %s96 = sphi 0, %s95
      %s110 = sphi 0, %s96
      %s116 = sphi 0, %s118
      %s119 = sphi 0, %s116
      %s120 = sphi 0, %s119
      %s136 = sphi 0, %s120
    $region4: #{tpu_custom_call.1} parent=1 // loop_header_branch
      %20 = sbr.rel (%p18) target = $region8
    $region5: #{tpu_custom_call.1} parent=1 // loop_body
      %s22 = ssub.s32 %s17, 1
      %s23 = ssub.s32 %s17, 2
      %s24 = sadd.s32 %s17, 1
      %s25 = ssub.s32 %s17, %s24
      %p26 = scmp.eq.s32.totalorder %s25, 0
      %s28 = sadd.s32 %s27, 1
      %s29 = scalar_select %p26, %s27, %s28
      %p32 = pneg %p26
      %p33 = scmp.eq.s32.totalorder %s17, 1
      %p34 = por %p32, %p33
      %p35 = scmp.ne.s32.totalorder %s27, %s30
      %p36 = scmp.eq.s32.totalorder %s17, 0
      %p37 = por %p35, %p36
      %p38 = scmp.ne.s32.totalorder %s27, %s30
      %p39 = scmp.eq.s32.totalorder %s22, 1
      %p40 = por %p38, %p39
      %p41 = scmp.ne.s32.totalorder %s30, %s31
      %p42 = scmp.eq.s32.totalorder %s22, 0
      %p43 = por %p41, %p42
      %p44 = scmp.ne.s32.totalorder %s30, %s31
      %p45 = scmp.eq.s32.totalorder %s23, 1
      %p46 = por %p44, %p45
      %p48 = scmp.ne.s32.totalorder %s31, %s47
      %p49 = scmp.eq.s32.totalorder %s23, 0
      %p50 = por %p48, %p49
      %s52 = sadd.s32 %s51, 1
      %p55 = scmp.eq.s32.totalorder %s17, 1
      %p56 = scmp.ne.s32.totalorder %s51, %s53
      %p57 = scmp.eq.s32.totalorder %s17, 0
      %p58 = por %p56, %p57
      %p59 = scmp.ne.s32.totalorder %s51, %s53
      %p60 = scmp.eq.s32.totalorder %s22, 1
      %p61 = por %p59, %p60
      %p62 = scmp.ne.s32.totalorder %s53, %s54
      %p63 = scmp.eq.s32.totalorder %s22, 0
      %p64 = por %p62, %p63
      %p65 = scmp.ne.s32.totalorder %s53, %s54
      %p66 = scmp.eq.s32.totalorder %s23, 1
      %p67 = por %p65, %p66
      %p69 = scmp.ne.s32.totalorder %s54, %s68
      %p70 = scmp.eq.s32.totalorder %s23, 0
      %p71 = por %p69, %p70
      %s73 = sadd.s32 %s72, 1
      %p76 = scmp.eq.s32.totalorder %s17, 1
      %p77 = scmp.ne.s32.totalorder %s72, %s74
      %p78 = scmp.eq.s32.totalorder %s17, 0
      %p79 = por %p77, %p78
      %p80 = scmp.ne.s32.totalorder %s72, %s74
      %p81 = scmp.eq.s32.totalorder %s22, 1
      %p82 = por %p80, %p81
      %p83 = scmp.ne.s32.totalorder %s74, %s75
      %p84 = scmp.eq.s32.totalorder %s22, 0
      %p85 = por %p83, %p84
      %p86 = scmp.ne.s32.totalorder %s74, %s75
      %p87 = scmp.eq.s32.totalorder %s23, 1
      %p88 = por %p86, %p87
      %p90 = scmp.ne.s32.totalorder %s75, %s89
      %p91 = scmp.eq.s32.totalorder %s23, 0
      %p92 = por %p90, %p91
      %s94 = sadd.s32 %s93, 1
      %p97 = scmp.eq.s32.totalorder %s17, 1
      %p98 = scmp.ne.s32.totalorder %s93, %s95
      %p99 = scmp.eq.s32.totalorder %s17, 0
      %p100 = por %p98, %p99
      %p101 = scmp.ne.s32.totalorder %s93, %s95
      %p102 = scmp.eq.s32.totalorder %s22, 1
      %p103 = por %p101, %p102
      %p104 = scmp.ne.s32.totalorder %s95, %s96
      %p105 = scmp.eq.s32.totalorder %s22, 0
      %p106 = por %p104, %p105
      %p107 = scmp.ne.s32.totalorder %s95, %s96
      %p108 = scmp.eq.s32.totalorder %s23, 1
      %p109 = por %p107, %p108
      %p111 = scmp.ne.s32.totalorder %s96, %s110
      %p112 = scmp.eq.s32.totalorder %s23, 0
      %p113 = por %p111, %p112
      %s114 = ssub.s32 %s17, %s24
      %p115 = scmp.eq.s32.totalorder %s114, 0
      %s117 = sadd.s32 %s116, 1
      %s118 = scalar_select %p115, %s116, %s117
      %p121 = pneg %p115
      %p122 = scmp.eq.s32.totalorder %s17, 1
      %p123 = por %p121, %p122
      %p124 = scmp.ne.s32.totalorder %s116, %s119
      %p125 = scmp.eq.s32.totalorder %s17, 0
      %p126 = por %p124, %p125
      %p127 = scmp.ne.s32.totalorder %s116, %s119
      %p128 = scmp.eq.s32.totalorder %s22, 1
      %p129 = por %p127, %p128
      %p130 = scmp.ne.s32.totalorder %s119, %s120
      %p131 = scmp.eq.s32.totalorder %s22, 0
      %p132 = por %p130, %p131
      %p133 = scmp.ne.s32.totalorder %s119, %s120
      %p134 = scmp.eq.s32.totalorder %s23, 1
      %p135 = por %p133, %p134
      %p137 = scmp.ne.s32.totalorder %s120, %s136
      %p138 = scmp.eq.s32.totalorder %s23, 0
      %p139 = por %p137, %p138
      %p140 = scmp.le.s32.totalorder 1, %s17
      %p141 = scmp.lt.s32.totalorder %s17, 3
      %p142 = pnand %p140, %p141
      %p143 = pneg %p142
      // Predicated region
      $region9: #{tpu_custom_call.1} parent=5 // pred_check
        _
      $region10: #{tpu_custom_call.1} parent=5 // pred_check_branch
        %145 = sbr.rel (%p142) target = $region12
      $region11: #{tpu_custom_call.1} parent=5 // pred_region
        %s146 = ssub.s32 %s17, 1
        // Predicated region
        $region13: #{tpu_custom_call.1} parent=11 // pred_check
          %p147 = pneg %p64
        $region14: #{tpu_custom_call.1} parent=11 // pred_check_branch
          %149 = sbr.rel (%p147) target = $region16
        $region15: #{tpu_custom_call.1} parent=11 // pred_region
          _
        $region16: #{tpu_custom_call.1} parent=11 // pred_fallthru
          _
        // Predicated region
        $region17: #{tpu_custom_call.1} parent=11 // pred_check
          %p150 = pneg %p85
        $region18: #{tpu_custom_call.1} parent=11 // pred_check_branch
          %152 = sbr.rel (%p150) target = $region20
        $region19: #{tpu_custom_call.1} parent=11 // pred_region
          _
        $region20: #{tpu_custom_call.1} parent=11 // pred_fallthru
          _
        // Predicated region
        $region21: #{tpu_custom_call.1} parent=11 // pred_check
          %p153 = pneg %p106
        $region22: #{tpu_custom_call.1} parent=11 // pred_check_branch
          %155 = sbr.rel (%p153) target = $region24
        $region23: #{tpu_custom_call.1} parent=11 // pred_region
          %157 = vsyncadd [#allocation6], 0
          %s159 = sshll.u32 %s3, 4
          %s160 = int_to_ptr.vmem [resolvable:$true] %s159
          %162 = dma.vmem_to_smem %s160, 16, [#allocation7], [#allocation6]
        $region24: #{tpu_custom_call.1} parent=11 // pred_fallthru
          _
      $region12: #{tpu_custom_call.1} parent=5 // pred_fallthru
        _
      %p163 = scmp.lt.s32.totalorder %s17, 2
      // Predicated region
      $region25: #{tpu_custom_call.1} parent=5 // pred_check
        %p164 = pneg %p163
      $region26: #{tpu_custom_call.1} parent=5 // pred_check_branch
        %166 = sbr.rel (%p164) target = $region28
      $region27: #{tpu_custom_call.1} parent=5 // pred_region
        // Predicated region
        $region29: #{tpu_custom_call.1} parent=27 // pred_check
          %p167 = pneg %p37
        $region30: #{tpu_custom_call.1} parent=27 // pred_check_branch
          %169 = sbr.rel (%p167) target = $region32
        $region31: #{tpu_custom_call.1} parent=27 // pred_region
          %s170 = sand.u32 %s27, 1
          %s171 = scalar_lea.sflag [#allocation4], %s170
          %s172 = sand.u32 %s27, 1
          %s173 = smul.addr %s172, 8
          %s174 = scalar_lea.vmem [#allocation3], %s173
          %176 = vsyncadd %s171, 0
          %s177 = smul.addr %s17, 2
          %s178 = smul.addr %s177, 4
          %s179 = scalar_lea.hbm %s0, %s178
          %s181 = sshll.u32 %s179, 4
          %s182 = int_to_ptr.hbm [resolvable:$true] %s181
          %s183 = sshll.u32 %s174, 4
          %s184 = int_to_ptr.vmem [resolvable:$true] %s183
          %186 = dma.hbm_to_vmem [thread:$0]  %s182, 128, %s184, %s171
        $region32: #{tpu_custom_call.1} parent=27 // pred_fallthru
          _
      $region28: #{tpu_custom_call.1} parent=5 // pred_fallthru
        _
      %p187 = scmp.le.s32.totalorder 1, %s17
      %p188 = scmp.lt.s32.totalorder %s17, 3
      %p189 = pnand %p187, %p188
      %p190 = pneg %p189
      // Predicated region
      $region33: #{tpu_custom_call.1} parent=5 // pred_check
        _
      $region34: #{tpu_custom_call.1} parent=5 // pred_check_branch
        %192 = sbr.rel (%p189) target = $region36
      $region35: #{tpu_custom_call.1} parent=5 // pred_region
        %s193 = ssub.s32 %s17, 1
        %s194 = sand.u32 %s30, 1
        %s195 = scalar_lea.sflag [#allocation4], %s194
        %s196 = sand.u32 %s30, 1
        %s197 = smul.addr %s196, 8
        %s198 = scalar_lea.vmem [#allocation3], %s197
        // Predicated region
        $region37: #{tpu_custom_call.1} parent=35 // pred_check
          %p199 = pneg %p43
        $region38: #{tpu_custom_call.1} parent=35 // pred_check_branch
          %201 = sbr.rel (%p199) target = $region40
        $region39: #{tpu_custom_call.1} parent=35 // pred_region
          %203 = dma.done %s195, 128
        $region40: #{tpu_custom_call.1} parent=35 // pred_fallthru
          _
        // Predicated region
        $region41: #{tpu_custom_call.1} parent=35 // pred_check
          %p204 = pneg %p106
        $region42: #{tpu_custom_call.1} parent=35 // pred_check_branch
          %206 = sbr.rel (%p204) target = $region44
        $region43: #{tpu_custom_call.1} parent=35 // pred_region
          %208 = dma.done [#allocation6], 16
        $region44: #{tpu_custom_call.1} parent=35 // pred_fallthru
          _
        %209 = sfence
        %s210 = sand.u32 %s30, 1
        %s211 = scalar_lea.sflag [#allocation4], %s210
        %s212 = sand.u32 %s30, 1
        %s213 = smul.addr %s212, 8
        %s214 = scalar_lea.vmem [#allocation3], %s213
        %p215 = pneg %p43
        %p216 = pneg %p40
        %p217 = pneg %p64
        %p218 = pneg %p61
        %p219 = pneg %p85
        %p220 = pneg %p82
        %p221 = pneg %p106
        %p222 = pneg %p103
        %p223 = pneg %p132
        %p224 = pneg %p129
        %s225 = sand.u32 %s119, 1
        %s226 = scalar_lea.sflag [#allocation5], %s225
        %s227 = sand.u32 %s119, 1
        %s228 = smul.addr %s227, 8
        %s229 = scalar_lea.vmem [#allocation8], %s228
        %v230 = vld [vmem:[%s198] sm:$0xff]
        %232 = vst [vmem:[#allocation1] ss:$2 sm:$0xff] %v230
        %v233 = vld.sshfl [vmem:[#allocation1] sm:$0xff pattern:$0x75316420]
        %v234 = vld.sshfl [vmem:[#allocation1 + $0x8] sm:$0xff pattern:$0x75316420]
        %vm237 = vcmask 1043456
        %v238 = vsel %vm237, %v233, 0.0
        %v239 = vsel %vm237, %v234, 0.0
        %v240 = vadd.f32 %v238, %v239
        %241 = vadd.xlane.f32.xlu0 %v240
        %v242 = vpop.xlane.xlu0 %241
        %v243 = vrcp.pop 256.0
        %v244 = vmul.f32 256.0, %v243
        %v245 = vsub.f32 1.0, %v244
        %v246 = vmul.f32 %v243, %v245
        %v247 = vadd.f32 %v243, %v246
        %vm248 = vweird.f32 %v243
        %v249 = vsel %vm248, %v243, %v247
        %v250 = vmul.f32 %v242, %v249
        %v251 = vld [vmem:[%s1] sm:$0xf]
        %v252 = vld [vmem:[%s2] sm:$0xf]
        %vm253 = vcmask 31744
        %v255 = vsel %vm253, %v251, 0
        %v258 = vsel %vm237, %v250, 0
        %260 = vmatpush.msra.mxu0 0.0
        %261 = vmatpush.msra.mxu0 0.0
        %262 = vmatpush.msra.mxu0 0.0
        %263 = vmatpush.msra.mxu0 0.0
        %264 = vmatpush.msra.mxu0 0.0
        %265 = vmatpush.msra.mxu0 0.0
        %266 = vmatpush.msra.mxu0 0.0
        %267 = vmatpush.msra.mxu0 0.0
        %268 = vmatpush.msra.mxu0 0.0
        %269 = vmatpush.msra.mxu0 0.0
        %270 = vmatpush.msra.mxu0 0.0
        %271 = vmatpush.msra.mxu0 0.0
        %272 = vmatpush.msra.mxu0 0.0
        %273 = vmatpush.msra.mxu0 0.0
        %274 = vmatpush.msra.mxu0 0.0
        %275 = vmatpush.msra.mxu0 %v258
        %276 = vmatmul.f32.gmra.mxu0 %v255
        %v277 = vpop.f32.mrf.mxu0
        %v278 = vadd.f32 %v252, %v277
        %279 = vdwg.mxu0
        %v280 = vxor.u32 %v278, 2147483648
        %v281 = vmul.f32 %v280, 1.442695
        %v282 = vpow.pop %v281
        %v283 = vadd.f32 %v282, 1.0
        %v284 = vrcp.pop %v283
        %v285 = vmul.f32 %v283, %v284
        %v286 = vsub.f32 1.0, %v285
        %v287 = vmul.f32 %v284, %v286
        %v288 = vadd.f32 %v284, %v287
        %vm289 = vweird.f32 %v283
        %vm290 = vweird.f32 %v284
        %vm291 = vmor %vm289, %vm290
        %v292 = vsel %vm291, %v284, %v288
        %v293 = vand.u32 2147483647, %v283
        %vm294 = vcmp.eq.f32.partialorder %v293, 8.507059e+37
        %v295 = vand.u32 %v283, 2147483648
        %v296 = vor.u32 1.1754944e-38, %v295
        %v297 = vsel %vm294, %v296, %v292
        %v298 = vmul.f32 1.0, %v297
        %300 = vset.pattern.permute.xlu0 0
        %301 = vperm.xlu0 %300, %v298
        %v302 = vpop.permute.xlu0 %301
        %v304 = vunpack.c.l.s4 839922192
        %v305 = vunpack.c.0.s8 %v304
        %v306 = vperm.slane %v302, %v305
        %v308 = vmul.f32 %v230, %v306
        %309 = vst [vmem:[#allocation2] sm:$0x3f] 0.0
        %311 = vst [vmem:[#allocation1] ss:$2 sm:$0xff] %v308
        %v312 = vld.sshfl [vmem:[#allocation1] sm:$0xff pattern:$0x75316420]
        %v313 = vld.sshfl [vmem:[#allocation1 + $0x8] sm:$0xff pattern:$0x75316420]
        %v316 = vsel %vm237, %v312, 0.0
        %v317 = vrot.slane %v316, 4
        %v318 = vadd.f32 %v316, %v317
        %v319 = vrot.slane %v318, 2
        %v320 = vadd.f32 %v318, %v319
        %v321 = vrot.slane %v320, 1
        %v322 = vadd.f32 %v320, %v321
        %v323 = vsel %vm237, %v313, 0.0
        %v324 = vrot.slane %v323, 4
        %v325 = vadd.f32 %v323, %v324
        %v326 = vrot.slane %v325, 2
        %v327 = vadd.f32 %v325, %v326
        %v328 = vrot.slane %v327, 1
        %v329 = vadd.f32 %v327, %v328
        %v330 = vrcp.pop 4.0
        %v331 = vmul.f32 4.0, %v330
        %v332 = vsub.f32 1.0, %v331
        %v333 = vmul.f32 %v330, %v332
        %v334 = vadd.f32 %v330, %v333
        %vm335 = vweird.f32 %v330
        %v336 = vsel %vm335, %v330, %v334
        %v337 = vmul.f32 %v322, %v336
        %v338 = vmul.f32 %v329, %v336
        %339 = vst [vmem:[#allocation1] ss:$2 sm:$0xff] %v308
        %v340 = vld.sshfl [vmem:[#allocation1] sm:$0xff pattern:$0x75316420]
        %v341 = vld.sshfl [vmem:[#allocation1 + $0x8] sm:$0xff pattern:$0x75316420]
        %v344 = vsel %vm237, %v340, -inf
        %v345 = vrot.slane %v344, 4
        %v346 = vmax.f32 %v344, %v345
        %v347 = vrot.slane %v346, 2
        %v348 = vmax.f32 %v346, %v347
        %v349 = vrot.slane %v348, 1
        %v350 = vmax.f32 %v348, %v349
        %v351 = vsel %vm237, %v341, -inf
        %v352 = vrot.slane %v351, 4
        %v353 = vmax.f32 %v351, %v352
        %v354 = vrot.slane %v353, 2
        %v355 = vmax.f32 %v353, %v354
        %v356 = vrot.slane %v355, 1
        %v357 = vmax.f32 %v355, %v356
        %v360 = vrot.slane %v338, 7
        %vm361 = vcmask 1040384
        %v362 = vsel %vm361, %v337, %v360
        %363 = vrot.lane.b32.xlu0 %v362, 51
        %v364 = vpop.permute.xlu0 %363
        %v365 = vrot.slane %v364, 7
        %vm366 = vcmask 416768
        %v367 = vsel %vm366, %v365, %v364
        %v369 = vlaneseq
        %vm370 = vcmp.ge.s32.totalorder %v369, 51
        %vm371 = vcmp.lt.s32.totalorder %v369, 307
        %vm372 = vmand %vm370, %vm371
        %373 = vst.msk [vmem:[#allocation2] ss:$2 sm:$0x7] %vm372, %v367
        %v376 = vrot.slane %v357, 7
        %v377 = vsel %vm361, %v350, %v376
        %378 = vrot.lane.b32.xlu0 %v377, 51
        %v379 = vpop.permute.xlu0 %378
        %v380 = vrot.slane %v379, 7
        %v381 = vsel %vm366, %v380, %v379
        %s383 = scalar_lea.vmem [#allocation2], 1
        %384 = vst.msk [vmem:[%s383] ss:$2 sm:$0x7] %vm372, %v381
        %v385 = vlaneseq
        %v386 = vand.u32 %v385, 127
        %v387 = vadd.s32 %v386, 128
        %v388 = vand.u32 %v386, 15
        %v389 = vand.u32 %v387, 15
        %vm390 = vcmp.ge.s32.totalorder %v388, 3
        %vm391 = vcmp.ge.s32.totalorder %v389, 3
        %vm392 = vcmp.le.s32.totalorder %v388, 18
        %vm393 = vcmp.le.s32.totalorder %v389, 18
        %vm394 = vmand %vm390, %vm392
        %vm395 = vmand %vm391, %vm393
        %s396 = sld [smem:[#allocation7]]
        %v397 = vld [vmem:[#allocation2] ss:$2 sm:$0x3]
        %v398 = vstv %s396
        %v399 = vmul.f32 %v398, %v397
        %v400 = vadd.f32 %v399, 0.0
        %s401 = sld [smem:[#allocation7 + $0x7]]
        %v402 = vld [vmem:[#allocation2] ss:$2 sm:$0x7]
        %v403 = vstv %s401
        %v404 = vmul.f32 %v403, %v402
        %406 = vrot.lane.b32.xlu0 %v404, 112
        %v407 = vpop.permute.xlu0 %406
        %v408 = vrot.slane %v407, 1
        %vm409 = vcmask 916480
        %v410 = vsel %vm409, %v407, %v408
        %v412 = vadd.f32 %v400, %v410
        %s413 = sld [smem:[#allocation7 + $0xe]]
        %v414 = vstv %s413
        %v415 = vmul.f32 %v414, %v402
        %417 = vrot.lane.b32.xlu0 %v415, 96
        %v418 = vpop.permute.xlu0 %417
        %v419 = vrot.slane %v418, 1
        %vm420 = vcmask 785408
        %v421 = vsel %vm420, %v418, %v419
        %v423 = vadd.f32 %v412, %v421
        %s424 = sld [smem:[#allocation7 + $0x15]]
        %v425 = vstv %s424
        %v426 = vmul.f32 %v425, %v402
        %428 = vrot.lane.b32.xlu0 %v426, 80
        %v429 = vpop.permute.xlu0 %428
        %v430 = vrot.slane %v429, 1
        %vm431 = vcmask 654336
        %v432 = vsel %vm431, %v429, %v430
        %v434 = vadd.f32 %v423, %v432
        %s435 = sld [smem:[#allocation7 + $0x1c]]
        %v436 = vstv %s435
        %v437 = vmul.f32 %v436, %v402
        %439 = vrot.lane.b32.xlu0 %v437, 64
        %v440 = vpop.permute.xlu0 %439
        %v441 = vrot.slane %v440, 1
        %vm442 = vcmask 523264
        %v443 = vsel %vm442, %v440, %v441
        %v445 = vadd.f32 %v434, %v443
        %s446 = sld [smem:[#allocation7 + $0x23]]
        %v447 = vstv %s446
        %v448 = vmul.f32 %v447, %v402
        %450 = vrot.lane.b32.xlu0 %v448, 48
        %v451 = vpop.permute.xlu0 %450
        %v452 = vrot.slane %v451, 1
        %vm453 = vcmask 392192
        %v454 = vsel %vm453, %v451, %v452
        %v456 = vadd.f32 %v445, %v454
        %s457 = sld [smem:[#allocation7 + $0x2a]]
        %v458 = vstv %s457
        %v459 = vmul.f32 %v458, %v402
        %461 = vrot.lane.b32.xlu0 %v459, 32
        %v462 = vpop.permute.xlu0 %461
        %v463 = vrot.slane %v462, 1
        %vm464 = vcmask 261120
        %v465 = vsel %vm464, %v462, %v463
        %v467 = vadd.f32 %v456, %v465
        %v469 = vperm.slane %v467, 0
        %v470 = vperm.slane %v467, 1
        %v473 = vsel %vm394, %v469, 0.0
        %v474 = vsel %vm395, %v470, 0.0
        %v475 = vadd.f32 %v473, 0.0
        %v476 = vadd.f32 %v474, 0.0
        %v477 = vadd.s32 %v388, 1
        %v478 = vadd.s32 %v389, 1
        %vm479 = vcmp.ge.s32.totalorder %v477, 3
        %vm480 = vcmp.ge.s32.totalorder %v478, 3
        %vm481 = vcmp.le.s32.totalorder %v477, 18
        %vm482 = vcmp.le.s32.totalorder %v478, 18
        %vm483 = vmand %vm479, %vm481
        %vm484 = vmand %vm480, %vm482
        %s485 = sld [smem:[#allocation7 + $0x1]]
        %v486 = vstv %s485
        %v487 = vmul.f32 %v486, %v402
        %v488 = vadd.f32 %v487, 0.0
        %s489 = sld [smem:[#allocation7 + $0x8]]
        %v490 = vstv %s489
        %v491 = vmul.f32 %v490, %v402
        %493 = vrot.lane.b32.xlu0 %v491, 112
        %v494 = vpop.permute.xlu0 %493
        %v495 = vrot.slane %v494, 1
        %v496 = vsel %vm409, %v494, %v495
        %v498 = vadd.f32 %v488, %v496
        %s499 = sld [smem:[#allocation7 + $0xf]]
        %v500 = vstv %s499
        %v501 = vmul.f32 %v500, %v402
        %503 = vrot.lane.b32.xlu0 %v501, 96
        %v504 = vpop.permute.xlu0 %503
        %v505 = vrot.slane %v504, 1
        %v506 = vsel %vm420, %v504, %v505
        %v508 = vadd.f32 %v498, %v506
        %s509 = sld [smem:[#allocation7 + $0x16]]
        %v510 = vstv %s509
        %v511 = vmul.f32 %v510, %v402
        %513 = vrot.lane.b32.xlu0 %v511, 80
        %v514 = vpop.permute.xlu0 %513
        %v515 = vrot.slane %v514, 1
        %v516 = vsel %vm431, %v514, %v515
        %v518 = vadd.f32 %v508, %v516
        %s519 = sld [smem:[#allocation7 + $0x1d]]
        %v520 = vstv %s519
        %v521 = vmul.f32 %v520, %v402
        %523 = vrot.lane.b32.xlu0 %v521, 64
        %v524 = vpop.permute.xlu0 %523
        %v525 = vrot.slane %v524, 1
        %v526 = vsel %vm442, %v524, %v525
        %v528 = vadd.f32 %v518, %v526
        %s529 = sld [smem:[#allocation7 + $0x24]]
        %v530 = vstv %s529
        %v531 = vmul.f32 %v530, %v402
        %533 = vrot.lane.b32.xlu0 %v531, 48
        %v534 = vpop.permute.xlu0 %533
        %v535 = vrot.slane %v534, 1
        %v536 = vsel %vm453, %v534, %v535
        %v538 = vadd.f32 %v528, %v536
        %s539 = sld [smem:[#allocation7 + $0x2b]]
        %v540 = vstv %s539
        %v541 = vmul.f32 %v540, %v402
        %543 = vrot.lane.b32.xlu0 %v541, 32
        %v544 = vpop.permute.xlu0 %543
        %v545 = vrot.slane %v544, 1
        %v546 = vsel %vm464, %v544, %v545
        %v548 = vadd.f32 %v538, %v546
        %v550 = vperm.slane %v548, 0
        %v551 = vperm.slane %v548, 1
        %v552 = vperm.slane %v548, 2
        %553 = vrot.lane.b32.xlu0 %v550, 127
        %v554 = vpop.permute.xlu0 %553
        %555 = vrot.lane.b32.xlu0 %v551, 127
        %v556 = vpop.permute.xlu0 %555
        %557 = vrot.lane.b32.xlu0 %v552, 127
        %v558 = vpop.permute.xlu0 %557
        %vm559 = vcmask 1039360
        %v560 = vsel %vm559, %v554, %v556
        %v561 = vsel %vm559, %v556, %v558
        %v564 = vsel %vm483, %v560, 0.0
        %v565 = vsel %vm484, %v561, 0.0
        %v566 = vadd.f32 %v475, %v564
        %v567 = vadd.f32 %v476, %v565
        %v568 = vadd.s32 %v388, 2
        %v569 = vadd.s32 %v389, 2
        %vm570 = vcmp.ge.s32.totalorder %v568, 3
        %vm571 = vcmp.ge.s32.totalorder %v569, 3
        %vm572 = vcmp.le.s32.totalorder %v568, 18
        %vm573 = vcmp.le.s32.totalorder %v569, 18
        %vm574 = vmand %vm570, %vm572
        %vm575 = vmand %vm571, %vm573
        %s576 = sld [smem:[#allocation7 + $0x2]]
        %v577 = vstv %s576
        %v578 = vmul.f32 %v577, %v402
        %v579 = vadd.f32 %v578, 0.0
        %s580 = sld [smem:[#allocation7 + $0x9]]
        %v581 = vstv %s580
        %v582 = vmul.f32 %v581, %v402
        %584 = vrot.lane.b32.xlu0 %v582, 112
        %v585 = vpop.permute.xlu0 %584
        %v586 = vrot.slane %v585, 1
        %v587 = vsel %vm409, %v585, %v586
        %v589 = vadd.f32 %v579, %v587
        %s590 = sld [smem:[#allocation7 + $0x10]]
        %v591 = vstv %s590
        %v592 = vmul.f32 %v591, %v402
        %594 = vrot.lane.b32.xlu0 %v592, 96
        %v595 = vpop.permute.xlu0 %594
        %v596 = vrot.slane %v595, 1
        %v597 = vsel %vm420, %v595, %v596
        %v599 = vadd.f32 %v589, %v597
        %s600 = sld [smem:[#allocation7 + $0x17]]
        %v601 = vstv %s600
        %v602 = vmul.f32 %v601, %v402
        %604 = vrot.lane.b32.xlu0 %v602, 80
        %v605 = vpop.permute.xlu0 %604
        %v606 = vrot.slane %v605, 1
        %v607 = vsel %vm431, %v605, %v606
        %v609 = vadd.f32 %v599, %v607
        %s610 = sld [smem:[#allocation7 + $0x1e]]
        %v611 = vstv %s610
        %v612 = vmul.f32 %v611, %v402
        %614 = vrot.lane.b32.xlu0 %v612, 64
        %v615 = vpop.permute.xlu0 %614
        %v616 = vrot.slane %v615, 1
        %v617 = vsel %vm442, %v615, %v616
        %v619 = vadd.f32 %v609, %v617
        %s620 = sld [smem:[#allocation7 + $0x25]]
        %v621 = vstv %s620
        %v622 = vmul.f32 %v621, %v402
        %624 = vrot.lane.b32.xlu0 %v622, 48
        %v625 = vpop.permute.xlu0 %624
        %v626 = vrot.slane %v625, 1
        %v627 = vsel %vm453, %v625, %v626
        %v629 = vadd.f32 %v619, %v627
        %s630 = sld [smem:[#allocation7 + $0x2c]]
        %v631 = vstv %s630
        %v632 = vmul.f32 %v631, %v402
        %634 = vrot.lane.b32.xlu0 %v632, 32
        %v635 = vpop.permute.xlu0 %634
        %v636 = vrot.slane %v635, 1
        %v637 = vsel %vm464, %v635, %v636
        %v639 = vadd.f32 %v629, %v637
        %v641 = vperm.slane %v639, 0
        %v642 = vperm.slane %v639, 1
        %v643 = vperm.slane %v639, 2
        %644 = vrot.lane.b32.xlu0 %v641, 126
        %v645 = vpop.permute.xlu0 %644
        %646 = vrot.lane.b32.xlu0 %v642, 126
        %v647 = vpop.permute.xlu0 %646
        %648 = vrot.lane.b32.xlu0 %v643, 126
        %v649 = vpop.permute.xlu0 %648
        %vm650 = vcmask 1031168
        %v651 = vsel %vm650, %v645, %v647
        %v652 = vsel %vm650, %v647, %v649
        %v655 = vsel %vm574, %v651, 0.0
        %v656 = vsel %vm575, %v652, 0.0
        %v657 = vadd.f32 %v566, %v655
        %v658 = vadd.f32 %v567, %v656
        %v659 = vadd.s32 %v388, 3
        %v660 = vadd.s32 %v389, 3
        %vm661 = vcmp.ge.s32.totalorder %v659, 3
        %vm662 = vcmp.ge.s32.totalorder %v660, 3
        %vm663 = vcmp.le.s32.totalorder %v659, 18
        %vm664 = vcmp.le.s32.totalorder %v660, 18
        %vm665 = vmand %vm661, %vm663
        %vm666 = vmand %vm662, %vm664
        %s667 = sld [smem:[#allocation7 + $0x3]]
        %v668 = vstv %s667
        %v669 = vmul.f32 %v668, %v402
        %v670 = vadd.f32 %v669, 0.0
        %s671 = sld [smem:[#allocation7 + $0xa]]
        %v672 = vstv %s671
        %v673 = vmul.f32 %v672, %v402
        %675 = vrot.lane.b32.xlu0 %v673, 112
        %v676 = vpop.permute.xlu0 %675
        %v677 = vrot.slane %v676, 1
        %v678 = vsel %vm409, %v676, %v677
        %v680 = vadd.f32 %v670, %v678
        %s681 = sld [smem:[#allocation7 + $0x11]]
        %v682 = vstv %s681
        %v683 = vmul.f32 %v682, %v402
        %685 = vrot.lane.b32.xlu0 %v683, 96
        %v686 = vpop.permute.xlu0 %685
        %v687 = vrot.slane %v686, 1
        %v688 = vsel %vm420, %v686, %v687
        %v690 = vadd.f32 %v680, %v688
        %s691 = sld [smem:[#allocation7 + $0x18]]
        %v692 = vstv %s691
        %v693 = vmul.f32 %v692, %v402
        %695 = vrot.lane.b32.xlu0 %v693, 80
        %v696 = vpop.permute.xlu0 %695
        %v697 = vrot.slane %v696, 1
        %v698 = vsel %vm431, %v696, %v697
        %v700 = vadd.f32 %v690, %v698
        %s701 = sld [smem:[#allocation7 + $0x1f]]
        %v702 = vstv %s701
        %v703 = vmul.f32 %v702, %v402
        %705 = vrot.lane.b32.xlu0 %v703, 64
        %v706 = vpop.permute.xlu0 %705
        %v707 = vrot.slane %v706, 1
        %v708 = vsel %vm442, %v706, %v707
        %v710 = vadd.f32 %v700, %v708
        %s711 = sld [smem:[#allocation7 + $0x26]]
        %v712 = vstv %s711
        %v713 = vmul.f32 %v712, %v402
        %715 = vrot.lane.b32.xlu0 %v713, 48
        %v716 = vpop.permute.xlu0 %715
        %v717 = vrot.slane %v716, 1
        %v718 = vsel %vm453, %v716, %v717
        %v720 = vadd.f32 %v710, %v718
        %s721 = sld [smem:[#allocation7 + $0x2d]]
        %v722 = vstv %s721
        %v723 = vmul.f32 %v722, %v402
        %725 = vrot.lane.b32.xlu0 %v723, 32
        %v726 = vpop.permute.xlu0 %725
        %v727 = vrot.slane %v726, 1
        %v728 = vsel %vm464, %v726, %v727
        %v730 = vadd.f32 %v720, %v728
        %v732 = vperm.slane %v730, 0
        %v733 = vperm.slane %v730, 1
        %v734 = vperm.slane %v730, 2
        %735 = vrot.lane.b32.xlu0 %v732, 125
        %v736 = vpop.permute.xlu0 %735
        %737 = vrot.lane.b32.xlu0 %v733, 125
        %v738 = vpop.permute.xlu0 %737
        %739 = vrot.lane.b32.xlu0 %v734, 125
        %v740 = vpop.permute.xlu0 %739
        %vm741 = vcmask 1022976
        %v742 = vsel %vm741, %v736, %v738
        %v743 = vsel %vm741, %v738, %v740
        %v746 = vsel %vm665, %v742, 0.0
        %v747 = vsel %vm666, %v743, 0.0
        %v748 = vadd.f32 %v657, %v746
        %v749 = vadd.f32 %v658, %v747
        %v750 = vadd.s32 %v388, 4
        %v751 = vadd.s32 %v389, 4
        %vm752 = vcmp.ge.s32.totalorder %v750, 3
        %vm753 = vcmp.ge.s32.totalorder %v751, 3
        %vm754 = vcmp.le.s32.totalorder %v750, 18
        %vm755 = vcmp.le.s32.totalorder %v751, 18
        %vm756 = vmand %vm752, %vm754
        %vm757 = vmand %vm753, %vm755
        %s758 = sld [smem:[#allocation7 + $0x4]]
        %v759 = vstv %s758
        %v760 = vmul.f32 %v759, %v402
        %v761 = vadd.f32 %v760, 0.0
        %s762 = sld [smem:[#allocation7 + $0xb]]
        %v763 = vstv %s762
        %v764 = vmul.f32 %v763, %v402
        %766 = vrot.lane.b32.xlu0 %v764, 112
        %v767 = vpop.permute.xlu0 %766
        %v768 = vrot.slane %v767, 1
        %v769 = vsel %vm409, %v767, %v768
        %v771 = vadd.f32 %v761, %v769
        %s772 = sld [smem:[#allocation7 + $0x12]]
        %v773 = vstv %s772
        %v774 = vmul.f32 %v773, %v402
        %776 = vrot.lane.b32.xlu0 %v774, 96
        %v777 = vpop.permute.xlu0 %776
        %v778 = vrot.slane %v777, 1
        %v779 = vsel %vm420, %v777, %v778
        %v781 = vadd.f32 %v771, %v779
        %s782 = sld [smem:[#allocation7 + $0x19]]
        %v783 = vstv %s782
        %v784 = vmul.f32 %v783, %v402
        %786 = vrot.lane.b32.xlu0 %v784, 80
        %v787 = vpop.permute.xlu0 %786
        %v788 = vrot.slane %v787, 1
        %v789 = vsel %vm431, %v787, %v788
        %v791 = vadd.f32 %v781, %v789
        %s792 = sld [smem:[#allocation7 + $0x20]]
        %v793 = vstv %s792
        %v794 = vmul.f32 %v793, %v402
        %796 = vrot.lane.b32.xlu0 %v794, 64
        %v797 = vpop.permute.xlu0 %796
        %v798 = vrot.slane %v797, 1
        %v799 = vsel %vm442, %v797, %v798
        %v801 = vadd.f32 %v791, %v799
        %s802 = sld [smem:[#allocation7 + $0x27]]
        %v803 = vstv %s802
        %v804 = vmul.f32 %v803, %v402
        %806 = vrot.lane.b32.xlu0 %v804, 48
        %v807 = vpop.permute.xlu0 %806
        %v808 = vrot.slane %v807, 1
        %v809 = vsel %vm453, %v807, %v808
        %v811 = vadd.f32 %v801, %v809
        %s812 = sld [smem:[#allocation7 + $0x2e]]
        %v813 = vstv %s812
        %v814 = vmul.f32 %v813, %v402
        %816 = vrot.lane.b32.xlu0 %v814, 32
        %v817 = vpop.permute.xlu0 %816
        %v818 = vrot.slane %v817, 1
        %v819 = vsel %vm464, %v817, %v818
        %v821 = vadd.f32 %v811, %v819
        %v823 = vperm.slane %v821, 0
        %v824 = vperm.slane %v821, 1
        %v825 = vperm.slane %v821, 2
        %826 = vrot.lane.b32.xlu0 %v823, 124
        %v827 = vpop.permute.xlu0 %826
        %828 = vrot.lane.b32.xlu0 %v824, 124
        %v829 = vpop.permute.xlu0 %828
        %830 = vrot.lane.b32.xlu0 %v825, 124
        %v831 = vpop.permute.xlu0 %830
        %vm832 = vcmask 1014784
        %v833 = vsel %vm832, %v827, %v829
        %v834 = vsel %vm832, %v829, %v831
        %v837 = vsel %vm756, %v833, 0.0
        %v838 = vsel %vm757, %v834, 0.0
        %v839 = vadd.f32 %v748, %v837
        %v840 = vadd.f32 %v749, %v838
        %v841 = vadd.s32 %v388, 5
        %v842 = vadd.s32 %v389, 5
        %vm843 = vcmp.ge.s32.totalorder %v841, 3
        %vm844 = vcmp.ge.s32.totalorder %v842, 3
        %vm845 = vcmp.le.s32.totalorder %v841, 18
        %vm846 = vcmp.le.s32.totalorder %v842, 18
        %vm847 = vmand %vm843, %vm845
        %vm848 = vmand %vm844, %vm846
        %s849 = sld [smem:[#allocation7 + $0x5]]
        %v850 = vstv %s849
        %v851 = vmul.f32 %v850, %v402
        %v852 = vadd.f32 %v851, 0.0
        %s853 = sld [smem:[#allocation7 + $0xc]]
        %v854 = vstv %s853
        %v855 = vmul.f32 %v854, %v402
        %857 = vrot.lane.b32.xlu0 %v855, 112
        %v858 = vpop.permute.xlu0 %857
        %v859 = vrot.slane %v858, 1
        %v860 = vsel %vm409, %v858, %v859
        %v862 = vadd.f32 %v852, %v860
        %s863 = sld [smem:[#allocation7 + $0x13]]
        %v864 = vstv %s863
        %v865 = vmul.f32 %v864, %v402
        %867 = vrot.lane.b32.xlu0 %v865, 96
        %v868 = vpop.permute.xlu0 %867
        %v869 = vrot.slane %v868, 1
        %v870 = vsel %vm420, %v868, %v869
        %v872 = vadd.f32 %v862, %v870
        %s873 = sld [smem:[#allocation7 + $0x1a]]
        %v874 = vstv %s873
        %v875 = vmul.f32 %v874, %v402
        %877 = vrot.lane.b32.xlu0 %v875, 80
        %v878 = vpop.permute.xlu0 %877
        %v879 = vrot.slane %v878, 1
        %v880 = vsel %vm431, %v878, %v879
        %v882 = vadd.f32 %v872, %v880
        %s883 = sld [smem:[#allocation7 + $0x21]]
        %v884 = vstv %s883
        %v885 = vmul.f32 %v884, %v402
        %887 = vrot.lane.b32.xlu0 %v885, 64
        %v888 = vpop.permute.xlu0 %887
        %v889 = vrot.slane %v888, 1
        %v890 = vsel %vm442, %v888, %v889
        %v892 = vadd.f32 %v882, %v890
        %s893 = sld [smem:[#allocation7 + $0x28]]
        %v894 = vstv %s893
        %v895 = vmul.f32 %v894, %v402
        %897 = vrot.lane.b32.xlu0 %v895, 48
        %v898 = vpop.permute.xlu0 %897
        %v899 = vrot.slane %v898, 1
        %v900 = vsel %vm453, %v898, %v899
        %v902 = vadd.f32 %v892, %v900
        %s903 = sld [smem:[#allocation7 + $0x2f]]
        %v904 = vstv %s903
        %v905 = vmul.f32 %v904, %v402
        %907 = vrot.lane.b32.xlu0 %v905, 32
        %v908 = vpop.permute.xlu0 %907
        %v909 = vrot.slane %v908, 1
        %v910 = vsel %vm464, %v908, %v909
        %v912 = vadd.f32 %v902, %v910
        %v914 = vperm.slane %v912, 0
        %v915 = vperm.slane %v912, 1
        %v916 = vperm.slane %v912, 2
        %917 = vrot.lane.b32.xlu0 %v914, 123
        %v918 = vpop.permute.xlu0 %917
        %919 = vrot.lane.b32.xlu0 %v915, 123
        %v920 = vpop.permute.xlu0 %919
        %921 = vrot.lane.b32.xlu0 %v916, 123
        %v922 = vpop.permute.xlu0 %921
        %vm923 = vcmask 1006592
        %v924 = vsel %vm923, %v918, %v920
        %v925 = vsel %vm923, %v920, %v922
        %v928 = vsel %vm847, %v924, 0.0
        %v929 = vsel %vm848, %v925, 0.0
        %v930 = vadd.f32 %v839, %v928
        %v931 = vadd.f32 %v840, %v929
        %v932 = vadd.s32 %v388, 6
        %v933 = vadd.s32 %v389, 6
        %vm934 = vcmp.ge.s32.totalorder %v932, 3
        %vm935 = vcmp.ge.s32.totalorder %v933, 3
        %vm936 = vcmp.le.s32.totalorder %v932, 18
        %vm937 = vcmp.le.s32.totalorder %v933, 18
        %vm938 = vmand %vm934, %vm936
        %vm939 = vmand %vm935, %vm937
        %s940 = sld [smem:[#allocation7 + $0x6]]
        %v941 = vstv %s940
        %v942 = vmul.f32 %v941, %v402
        %v943 = vadd.f32 %v942, 0.0
        %s944 = sld [smem:[#allocation7 + $0xd]]
        %v945 = vstv %s944
        %v946 = vmul.f32 %v945, %v402
        %948 = vrot.lane.b32.xlu0 %v946, 112
        %v949 = vpop.permute.xlu0 %948
        %v950 = vrot.slane %v949, 1
        %v951 = vsel %vm409, %v949, %v950
        %v953 = vadd.f32 %v943, %v951
        %s954 = sld [smem:[#allocation7 + $0x14]]
        %v955 = vstv %s954
        %v956 = vmul.f32 %v955, %v402
        %958 = vrot.lane.b32.xlu0 %v956, 96
        %v959 = vpop.permute.xlu0 %958
        %v960 = vrot.slane %v959, 1
        %v961 = vsel %vm420, %v959, %v960
        %v963 = vadd.f32 %v953, %v961
        %s964 = sld [smem:[#allocation7 + $0x1b]]
        %v965 = vstv %s964
        %v966 = vmul.f32 %v965, %v402
        %968 = vrot.lane.b32.xlu0 %v966, 80
        %v969 = vpop.permute.xlu0 %968
        %v970 = vrot.slane %v969, 1
        %v971 = vsel %vm431, %v969, %v970
        %v973 = vadd.f32 %v963, %v971
        %s974 = sld [smem:[#allocation7 + $0x22]]
        %v975 = vstv %s974
        %v976 = vmul.f32 %v975, %v402
        %978 = vrot.lane.b32.xlu0 %v976, 64
        %v979 = vpop.permute.xlu0 %978
        %v980 = vrot.slane %v979, 1
        %v981 = vsel %vm442, %v979, %v980
        %v983 = vadd.f32 %v973, %v981
        %s984 = sld [smem:[#allocation7 + $0x29]]
        %v985 = vstv %s984
        %v986 = vmul.f32 %v985, %v402
        %988 = vrot.lane.b32.xlu0 %v986, 48
        %v989 = vpop.permute.xlu0 %988
        %v990 = vrot.slane %v989, 1
        %v991 = vsel %vm453, %v989, %v990
        %v993 = vadd.f32 %v983, %v991
        %s994 = sld [smem:[#allocation7 + $0x30]]
        %v995 = vstv %s994
        %v996 = vmul.f32 %v995, %v402
        %998 = vrot.lane.b32.xlu0 %v996, 32
        %v999 = vpop.permute.xlu0 %998
        %v1000 = vrot.slane %v999, 1
        %v1001 = vsel %vm464, %v999, %v1000
        %v1003 = vadd.f32 %v993, %v1001
        %v1005 = vperm.slane %v1003, 0
        %v1006 = vperm.slane %v1003, 1
        %v1007 = vperm.slane %v1003, 2
        %1008 = vrot.lane.b32.xlu0 %v1005, 122
        %v1009 = vpop.permute.xlu0 %1008
        %1010 = vrot.lane.b32.xlu0 %v1006, 122
        %v1011 = vpop.permute.xlu0 %1010
        %1012 = vrot.lane.b32.xlu0 %v1007, 122
        %v1013 = vpop.permute.xlu0 %1012
        %vm1014 = vcmask 998400
        %v1015 = vsel %vm1014, %v1009, %v1011
        %v1016 = vsel %vm1014, %v1011, %v1013
        %v1019 = vsel %vm938, %v1015, 0.0
        %v1020 = vsel %vm939, %v1016, 0.0
        %v1021 = vadd.f32 %v930, %v1019
        %v1022 = vadd.f32 %v931, %v1020
        %s1023 = sld [smem:[#allocation7 + $0x31]]
        %s1024 = scalar_lea.vmem [#allocation2], 1
        %v1025 = vld [vmem:[%s1024] ss:$2 sm:$0x3]
        %v1026 = vstv %s1023
        %v1027 = vmul.f32 %v1026, %v1025
        %v1028 = vadd.f32 %v1027, 0.0
        %s1029 = sld [smem:[#allocation7 + $0x38]]
        %v1030 = vld [vmem:[%s383] ss:$2 sm:$0x7]
        %v1031 = vstv %s1029
        %v1032 = vmul.f32 %v1031, %v1030
        %1034 = vrot.lane.b32.xlu0 %v1032, 112
        %v1035 = vpop.permute.xlu0 %1034
        %v1036 = vrot.slane %v1035, 1
        %v1037 = vsel %vm409, %v1035, %v1036
        %v1039 = vadd.f32 %v1028, %v1037
        %s1040 = sld [smem:[#allocation7 + $0x3f]]
        %v1041 = vstv %s1040
        %v1042 = vmul.f32 %v1041, %v1030
        %1044 = vrot.lane.b32.xlu0 %v1042, 96
        %v1045 = vpop.permute.xlu0 %1044
        %v1046 = vrot.slane %v1045, 1
        %v1047 = vsel %vm420, %v1045, %v1046
        %v1049 = vadd.f32 %v1039, %v1047
        %s1050 = sld [smem:[#allocation7 + $0x46]]
        %v1051 = vstv %s1050
        %v1052 = vmul.f32 %v1051, %v1030
        %1054 = vrot.lane.b32.xlu0 %v1052, 80
        %v1055 = vpop.permute.xlu0 %1054
        %v1056 = vrot.slane %v1055, 1
        %v1057 = vsel %vm431, %v1055, %v1056
        %v1059 = vadd.f32 %v1049, %v1057
        %s1060 = sld [smem:[#allocation7 + $0x4d]]
        %v1061 = vstv %s1060
        %v1062 = vmul.f32 %v1061, %v1030
        %1064 = vrot.lane.b32.xlu0 %v1062, 64
        %v1065 = vpop.permute.xlu0 %1064
        %v1066 = vrot.slane %v1065, 1
        %v1067 = vsel %vm442, %v1065, %v1066
        %v1069 = vadd.f32 %v1059, %v1067
        %s1070 = sld [smem:[#allocation7 + $0x54]]
        %v1071 = vstv %s1070
        %v1072 = vmul.f32 %v1071, %v1030
        %1074 = vrot.lane.b32.xlu0 %v1072, 48
        %v1075 = vpop.permute.xlu0 %1074
        %v1076 = vrot.slane %v1075, 1
        %v1077 = vsel %vm453, %v1075, %v1076
        %v1079 = vadd.f32 %v1069, %v1077
        %s1080 = sld [smem:[#allocation7 + $0x5b]]
        %v1081 = vstv %s1080
        %v1082 = vmul.f32 %v1081, %v1030
        %1084 = vrot.lane.b32.xlu0 %v1082, 32
        %v1085 = vpop.permute.xlu0 %1084
        %v1086 = vrot.slane %v1085, 1
        %v1087 = vsel %vm464, %v1085, %v1086
        %v1089 = vadd.f32 %v1079, %v1087
        %v1091 = vperm.slane %v1089, 0
        %v1092 = vperm.slane %v1089, 1
        %v1095 = vsel %vm394, %v1091, 0.0
        %v1096 = vsel %vm395, %v1092, 0.0
        %v1097 = vadd.f32 %v1021, %v1095
        %v1098 = vadd.f32 %v1022, %v1096
        %s1099 = sld [smem:[#allocation7 + $0x32]]
        %v1100 = vstv %s1099
        %v1101 = vmul.f32 %v1100, %v1030
        %v1102 = vadd.f32 %v1101, 0.0
        %s1103 = sld [smem:[#allocation7 + $0x39]]
        %v1104 = vstv %s1103
        %v1105 = vmul.f32 %v1104, %v1030
        %1107 = vrot.lane.b32.xlu0 %v1105, 112
        %v1108 = vpop.permute.xlu0 %1107
        %v1109 = vrot.slane %v1108, 1
        %v1110 = vsel %vm409, %v1108, %v1109
        %v1112 = vadd.f32 %v1102, %v1110
        %s1113 = sld [smem:[#allocation7 + $0x40]]
        %v1114 = vstv %s1113
        %v1115 = vmul.f32 %v1114, %v1030
        %1117 = vrot.lane.b32.xlu0 %v1115, 96
        %v1118 = vpop.permute.xlu0 %1117
        %v1119 = vrot.slane %v1118, 1
        %v1120 = vsel %vm420, %v1118, %v1119
        %v1122 = vadd.f32 %v1112, %v1120
        %s1123 = sld [smem:[#allocation7 + $0x47]]
        %v1124 = vstv %s1123
        %v1125 = vmul.f32 %v1124, %v1030
        %1127 = vrot.lane.b32.xlu0 %v1125, 80
        %v1128 = vpop.permute.xlu0 %1127
        %v1129 = vrot.slane %v1128, 1
        %v1130 = vsel %vm431, %v1128, %v1129
        %v1132 = vadd.f32 %v1122, %v1130
        %s1133 = sld [smem:[#allocation7 + $0x4e]]
        %v1134 = vstv %s1133
        %v1135 = vmul.f32 %v1134, %v1030
        %1137 = vrot.lane.b32.xlu0 %v1135, 64
        %v1138 = vpop.permute.xlu0 %1137
        %v1139 = vrot.slane %v1138, 1
        %v1140 = vsel %vm442, %v1138, %v1139
        %v1142 = vadd.f32 %v1132, %v1140
        %s1143 = sld [smem:[#allocation7 + $0x55]]
        %v1144 = vstv %s1143
        %v1145 = vmul.f32 %v1144, %v1030
        %1147 = vrot.lane.b32.xlu0 %v1145, 48
        %v1148 = vpop.permute.xlu0 %1147
        %v1149 = vrot.slane %v1148, 1
        %v1150 = vsel %vm453, %v1148, %v1149
        %v1152 = vadd.f32 %v1142, %v1150
        %s1153 = sld [smem:[#allocation7 + $0x5c]]
        %v1154 = vstv %s1153
        %v1155 = vmul.f32 %v1154, %v1030
        %1157 = vrot.lane.b32.xlu0 %v1155, 32
        %v1158 = vpop.permute.xlu0 %1157
        %v1159 = vrot.slane %v1158, 1
        %v1160 = vsel %vm464, %v1158, %v1159
        %v1162 = vadd.f32 %v1152, %v1160
        %v1164 = vperm.slane %v1162, 0
        %v1165 = vperm.slane %v1162, 1
        %v1166 = vperm.slane %v1162, 2
        %1167 = vrot.lane.b32.xlu0 %v1164, 127
        %v1168 = vpop.permute.xlu0 %1167
        %1169 = vrot.lane.b32.xlu0 %v1165, 127
        %v1170 = vpop.permute.xlu0 %1169
        %1171 = vrot.lane.b32.xlu0 %v1166, 127
        %v1172 = vpop.permute.xlu0 %1171
        %v1173 = vsel %vm559, %v1168, %v1170
        %v1174 = vsel %vm559, %v1170, %v1172
        %v1177 = vsel %vm483, %v1173, 0.0
        %v1178 = vsel %vm484, %v1174, 0.0
        %v1179 = vadd.f32 %v1097, %v1177
        %v1180 = vadd.f32 %v1098, %v1178
        %s1181 = sld [smem:[#allocation7 + $0x33]]
        %v1182 = vstv %s1181
        %v1183 = vmul.f32 %v1182, %v1030
        %v1184 = vadd.f32 %v1183, 0.0
        %s1185 = sld [smem:[#allocation7 + $0x3a]]
        %v1186 = vstv %s1185
        %v1187 = vmul.f32 %v1186, %v1030
        %1189 = vrot.lane.b32.xlu0 %v1187, 112
        %v1190 = vpop.permute.xlu0 %1189
        %v1191 = vrot.slane %v1190, 1
        %v1192 = vsel %vm409, %v1190, %v1191
        %v1194 = vadd.f32 %v1184, %v1192
        %s1195 = sld [smem:[#allocation7 + $0x41]]
        %v1196 = vstv %s1195
        %v1197 = vmul.f32 %v1196, %v1030
        %1199 = vrot.lane.b32.xlu0 %v1197, 96
        %v1200 = vpop.permute.xlu0 %1199
        %v1201 = vrot.slane %v1200, 1
        %v1202 = vsel %vm420, %v1200, %v1201
        %v1204 = vadd.f32 %v1194, %v1202
        %s1205 = sld [smem:[#allocation7 + $0x48]]
        %v1206 = vstv %s1205
        %v1207 = vmul.f32 %v1206, %v1030
        %1209 = vrot.lane.b32.xlu0 %v1207, 80
        %v1210 = vpop.permute.xlu0 %1209
        %v1211 = vrot.slane %v1210, 1
        %v1212 = vsel %vm431, %v1210, %v1211
        %v1214 = vadd.f32 %v1204, %v1212
        %s1215 = sld [smem:[#allocation7 + $0x4f]]
        %v1216 = vstv %s1215
        %v1217 = vmul.f32 %v1216, %v1030
        %1219 = vrot.lane.b32.xlu0 %v1217, 64
        %v1220 = vpop.permute.xlu0 %1219
        %v1221 = vrot.slane %v1220, 1
        %v1222 = vsel %vm442, %v1220, %v1221
        %v1224 = vadd.f32 %v1214, %v1222
        %s1225 = sld [smem:[#allocation7 + $0x56]]
        %v1226 = vstv %s1225
        %v1227 = vmul.f32 %v1226, %v1030
        %1229 = vrot.lane.b32.xlu0 %v1227, 48
        %v1230 = vpop.permute.xlu0 %1229
        %v1231 = vrot.slane %v1230, 1
        %v1232 = vsel %vm453, %v1230, %v1231
        %v1234 = vadd.f32 %v1224, %v1232
        %s1235 = sld [smem:[#allocation7 + $0x5d]]
        %v1236 = vstv %s1235
        %v1237 = vmul.f32 %v1236, %v1030
        %1239 = vrot.lane.b32.xlu0 %v1237, 32
        %v1240 = vpop.permute.xlu0 %1239
        %v1241 = vrot.slane %v1240, 1
        %v1242 = vsel %vm464, %v1240, %v1241
        %v1244 = vadd.f32 %v1234, %v1242
        %v1246 = vperm.slane %v1244, 0
        %v1247 = vperm.slane %v1244, 1
        %v1248 = vperm.slane %v1244, 2
        %1249 = vrot.lane.b32.xlu0 %v1246, 126
        %v1250 = vpop.permute.xlu0 %1249
        %1251 = vrot.lane.b32.xlu0 %v1247, 126
        %v1252 = vpop.permute.xlu0 %1251
        %1253 = vrot.lane.b32.xlu0 %v1248, 126
        %v1254 = vpop.permute.xlu0 %1253
        %v1255 = vsel %vm650, %v1250, %v1252
        %v1256 = vsel %vm650, %v1252, %v1254
        %v1259 = vsel %vm574, %v1255, 0.0
        %v1260 = vsel %vm575, %v1256, 0.0
        %v1261 = vadd.f32 %v1179, %v1259
        %v1262 = vadd.f32 %v1180, %v1260
        %s1263 = sld [smem:[#allocation7 + $0x34]]
        %v1264 = vstv %s1263
        %v1265 = vmul.f32 %v1264, %v1030
        %v1266 = vadd.f32 %v1265, 0.0
        %s1267 = sld [smem:[#allocation7 + $0x3b]]
        %v1268 = vstv %s1267
        %v1269 = vmul.f32 %v1268, %v1030
        %1271 = vrot.lane.b32.xlu0 %v1269, 112
        %v1272 = vpop.permute.xlu0 %1271
        %v1273 = vrot.slane %v1272, 1
        %v1274 = vsel %vm409, %v1272, %v1273
        %v1276 = vadd.f32 %v1266, %v1274
        %s1277 = sld [smem:[#allocation7 + $0x42]]
        %v1278 = vstv %s1277
        %v1279 = vmul.f32 %v1278, %v1030
        %1281 = vrot.lane.b32.xlu0 %v1279, 96
        %v1282 = vpop.permute.xlu0 %1281
        %v1283 = vrot.slane %v1282, 1
        %v1284 = vsel %vm420, %v1282, %v1283
        %v1286 = vadd.f32 %v1276, %v1284
        %s1287 = sld [smem:[#allocation7 + $0x49]]
        %v1288 = vstv %s1287
        %v1289 = vmul.f32 %v1288, %v1030
        %1291 = vrot.lane.b32.xlu0 %v1289, 80
        %v1292 = vpop.permute.xlu0 %1291
        %v1293 = vrot.slane %v1292, 1
        %v1294 = vsel %vm431, %v1292, %v1293
        %v1296 = vadd.f32 %v1286, %v1294
        %s1297 = sld [smem:[#allocation7 + $0x50]]
        %v1298 = vstv %s1297
        %v1299 = vmul.f32 %v1298, %v1030
        %1301 = vrot.lane.b32.xlu0 %v1299, 64
        %v1302 = vpop.permute.xlu0 %1301
        %v1303 = vrot.slane %v1302, 1
        %v1304 = vsel %vm442, %v1302, %v1303
        %v1306 = vadd.f32 %v1296, %v1304
        %s1307 = sld [smem:[#allocation7 + $0x57]]
        %v1308 = vstv %s1307
        %v1309 = vmul.f32 %v1308, %v1030
        %1311 = vrot.lane.b32.xlu0 %v1309, 48
        %v1312 = vpop.permute.xlu0 %1311
        %v1313 = vrot.slane %v1312, 1
        %v1314 = vsel %vm453, %v1312, %v1313
        %v1316 = vadd.f32 %v1306, %v1314
        %s1317 = sld [smem:[#allocation7 + $0x5e]]
        %v1318 = vstv %s1317
        %v1319 = vmul.f32 %v1318, %v1030
        %1321 = vrot.lane.b32.xlu0 %v1319, 32
        %v1322 = vpop.permute.xlu0 %1321
        %v1323 = vrot.slane %v1322, 1
        %v1324 = vsel %vm464, %v1322, %v1323
        %v1326 = vadd.f32 %v1316, %v1324
        %v1328 = vperm.slane %v1326, 0
        %v1329 = vperm.slane %v1326, 1
        %v1330 = vperm.slane %v1326, 2
        %1331 = vrot.lane.b32.xlu0 %v1328, 125
        %v1332 = vpop.permute.xlu0 %1331
        %1333 = vrot.lane.b32.xlu0 %v1329, 125
        %v1334 = vpop.permute.xlu0 %1333
        %1335 = vrot.lane.b32.xlu0 %v1330, 125
        %v1336 = vpop.permute.xlu0 %1335
        %v1337 = vsel %vm741, %v1332, %v1334
        %v1338 = vsel %vm741, %v1334, %v1336
        %v1341 = vsel %vm665, %v1337, 0.0
        %v1342 = vsel %vm666, %v1338, 0.0
        %v1343 = vadd.f32 %v1261, %v1341
        %v1344 = vadd.f32 %v1262, %v1342
        %s1345 = sld [smem:[#allocation7 + $0x35]]
        %v1346 = vstv %s1345
        %v1347 = vmul.f32 %v1346, %v1030
        %v1348 = vadd.f32 %v1347, 0.0
        %s1349 = sld [smem:[#allocation7 + $0x3c]]
        %v1350 = vstv %s1349
        %v1351 = vmul.f32 %v1350, %v1030
        %1353 = vrot.lane.b32.xlu0 %v1351, 112
        %v1354 = vpop.permute.xlu0 %1353
        %v1355 = vrot.slane %v1354, 1
        %v1356 = vsel %vm409, %v1354, %v1355
        %v1358 = vadd.f32 %v1348, %v1356
        %s1359 = sld [smem:[#allocation7 + $0x43]]
        %v1360 = vstv %s1359
        %v1361 = vmul.f32 %v1360, %v1030
        %1363 = vrot.lane.b32.xlu0 %v1361, 96
        %v1364 = vpop.permute.xlu0 %1363
        %v1365 = vrot.slane %v1364, 1
        %v1366 = vsel %vm420, %v1364, %v1365
        %v1368 = vadd.f32 %v1358, %v1366
        %s1369 = sld [smem:[#allocation7 + $0x4a]]
        %v1370 = vstv %s1369
        %v1371 = vmul.f32 %v1370, %v1030
        %1373 = vrot.lane.b32.xlu0 %v1371, 80
        %v1374 = vpop.permute.xlu0 %1373
        %v1375 = vrot.slane %v1374, 1
        %v1376 = vsel %vm431, %v1374, %v1375
        %v1378 = vadd.f32 %v1368, %v1376
        %s1379 = sld [smem:[#allocation7 + $0x51]]
        %v1380 = vstv %s1379
        %v1381 = vmul.f32 %v1380, %v1030
        %1383 = vrot.lane.b32.xlu0 %v1381, 64
        %v1384 = vpop.permute.xlu0 %1383
        %v1385 = vrot.slane %v1384, 1
        %v1386 = vsel %vm442, %v1384, %v1385
        %v1388 = vadd.f32 %v1378, %v1386
        %s1389 = sld [smem:[#allocation7 + $0x58]]
        %v1390 = vstv %s1389
        %v1391 = vmul.f32 %v1390, %v1030
        %1393 = vrot.lane.b32.xlu0 %v1391, 48
        %v1394 = vpop.permute.xlu0 %1393
        %v1395 = vrot.slane %v1394, 1
        %v1396 = vsel %vm453, %v1394, %v1395
        %v1398 = vadd.f32 %v1388, %v1396
        %s1399 = sld [smem:[#allocation7 + $0x5f]]
        %v1400 = vstv %s1399
        %v1401 = vmul.f32 %v1400, %v1030
        %1403 = vrot.lane.b32.xlu0 %v1401, 32
        %v1404 = vpop.permute.xlu0 %1403
        %v1405 = vrot.slane %v1404, 1
        %v1406 = vsel %vm464, %v1404, %v1405
        %v1408 = vadd.f32 %v1398, %v1406
        %v1410 = vperm.slane %v1408, 0
        %v1411 = vperm.slane %v1408, 1
        %v1412 = vperm.slane %v1408, 2
        %1413 = vrot.lane.b32.xlu0 %v1410, 124
        %v1414 = vpop.permute.xlu0 %1413
        %1415 = vrot.lane.b32.xlu0 %v1411, 124
        %v1416 = vpop.permute.xlu0 %1415
        %1417 = vrot.lane.b32.xlu0 %v1412, 124
        %v1418 = vpop.permute.xlu0 %1417
        %v1419 = vsel %vm832, %v1414, %v1416
        %v1420 = vsel %vm832, %v1416, %v1418
        %v1423 = vsel %vm756, %v1419, 0.0
        %v1424 = vsel %vm757, %v1420, 0.0
        %v1425 = vadd.f32 %v1343, %v1423
        %v1426 = vadd.f32 %v1344, %v1424
        %s1427 = sld [smem:[#allocation7 + $0x36]]
        %v1428 = vstv %s1427
        %v1429 = vmul.f32 %v1428, %v1030
        %v1430 = vadd.f32 %v1429, 0.0
        %s1431 = sld [smem:[#allocation7 + $0x3d]]
        %v1432 = vstv %s1431
        %v1433 = vmul.f32 %v1432, %v1030
        %1435 = vrot.lane.b32.xlu0 %v1433, 112
        %v1436 = vpop.permute.xlu0 %1435
        %v1437 = vrot.slane %v1436, 1
        %v1438 = vsel %vm409, %v1436, %v1437
        %v1440 = vadd.f32 %v1430, %v1438
        %s1441 = sld [smem:[#allocation7 + $0x44]]
        %v1442 = vstv %s1441
        %v1443 = vmul.f32 %v1442, %v1030
        %1445 = vrot.lane.b32.xlu0 %v1443, 96
        %v1446 = vpop.permute.xlu0 %1445
        %v1447 = vrot.slane %v1446, 1
        %v1448 = vsel %vm420, %v1446, %v1447
        %v1450 = vadd.f32 %v1440, %v1448
        %s1451 = sld [smem:[#allocation7 + $0x4b]]
        %v1452 = vstv %s1451
        %v1453 = vmul.f32 %v1452, %v1030
        %1455 = vrot.lane.b32.xlu0 %v1453, 80
        %v1456 = vpop.permute.xlu0 %1455
        %v1457 = vrot.slane %v1456, 1
        %v1458 = vsel %vm431, %v1456, %v1457
        %v1460 = vadd.f32 %v1450, %v1458
        %s1461 = sld [smem:[#allocation7 + $0x52]]
        %v1462 = vstv %s1461
        %v1463 = vmul.f32 %v1462, %v1030
        %1465 = vrot.lane.b32.xlu0 %v1463, 64
        %v1466 = vpop.permute.xlu0 %1465
        %v1467 = vrot.slane %v1466, 1
        %v1468 = vsel %vm442, %v1466, %v1467
        %v1470 = vadd.f32 %v1460, %v1468
        %s1471 = sld [smem:[#allocation7 + $0x59]]
        %v1472 = vstv %s1471
        %v1473 = vmul.f32 %v1472, %v1030
        %1475 = vrot.lane.b32.xlu0 %v1473, 48
        %v1476 = vpop.permute.xlu0 %1475
        %v1477 = vrot.slane %v1476, 1
        %v1478 = vsel %vm453, %v1476, %v1477
        %v1480 = vadd.f32 %v1470, %v1478
        %s1481 = sld [smem:[#allocation7 + $0x60]]
        %v1482 = vstv %s1481
        %v1483 = vmul.f32 %v1482, %v1030
        %1485 = vrot.lane.b32.xlu0 %v1483, 32
        %v1486 = vpop.permute.xlu0 %1485
        %v1487 = vrot.slane %v1486, 1
        %v1488 = vsel %vm464, %v1486, %v1487
        %v1490 = vadd.f32 %v1480, %v1488
        %v1492 = vperm.slane %v1490, 0
        %v1493 = vperm.slane %v1490, 1
        %v1494 = vperm.slane %v1490, 2
        %1495 = vrot.lane.b32.xlu0 %v1492, 123
        %v1496 = vpop.permute.xlu0 %1495
        %1497 = vrot.lane.b32.xlu0 %v1493, 123
        %v1498 = vpop.permute.xlu0 %1497
        %1499 = vrot.lane.b32.xlu0 %v1494, 123
        %v1500 = vpop.permute.xlu0 %1499
        %v1501 = vsel %vm923, %v1496, %v1498
        %v1502 = vsel %vm923, %v1498, %v1500
        %v1505 = vsel %vm847, %v1501, 0.0
        %v1506 = vsel %vm848, %v1502, 0.0
        %v1507 = vadd.f32 %v1425, %v1505
        %v1508 = vadd.f32 %v1426, %v1506
        %s1509 = sld [smem:[#allocation7 + $0x37]]
        %v1510 = vstv %s1509
        %v1511 = vmul.f32 %v1510, %v1030
        %v1512 = vadd.f32 %v1511, 0.0
        %s1513 = sld [smem:[#allocation7 + $0x3e]]
        %v1514 = vstv %s1513
        %v1515 = vmul.f32 %v1514, %v1030
        %1517 = vrot.lane.b32.xlu0 %v1515, 112
        %v1518 = vpop.permute.xlu0 %1517
        %v1519 = vrot.slane %v1518, 1
        %v1520 = vsel %vm409, %v1518, %v1519
        %v1522 = vadd.f32 %v1512, %v1520
        %s1523 = sld [smem:[#allocation7 + $0x45]]
        %v1524 = vstv %s1523
        %v1525 = vmul.f32 %v1524, %v1030
        %1527 = vrot.lane.b32.xlu0 %v1525, 96
        %v1528 = vpop.permute.xlu0 %1527
        %v1529 = vrot.slane %v1528, 1
        %v1530 = vsel %vm420, %v1528, %v1529
        %v1532 = vadd.f32 %v1522, %v1530
        %s1533 = sld [smem:[#allocation7 + $0x4c]]
        %v1534 = vstv %s1533
        %v1535 = vmul.f32 %v1534, %v1030
        %1537 = vrot.lane.b32.xlu0 %v1535, 80
        %v1538 = vpop.permute.xlu0 %1537
        %v1539 = vrot.slane %v1538, 1
        %v1540 = vsel %vm431, %v1538, %v1539
        %v1542 = vadd.f32 %v1532, %v1540
        %s1543 = sld [smem:[#allocation7 + $0x53]]
        %v1544 = vstv %s1543
        %v1545 = vmul.f32 %v1544, %v1030
        %1547 = vrot.lane.b32.xlu0 %v1545, 64
        %v1548 = vpop.permute.xlu0 %1547
        %v1549 = vrot.slane %v1548, 1
        %v1550 = vsel %vm442, %v1548, %v1549
        %v1552 = vadd.f32 %v1542, %v1550
        %s1553 = sld [smem:[#allocation7 + $0x5a]]
        %v1554 = vstv %s1553
        %v1555 = vmul.f32 %v1554, %v1030
        %1557 = vrot.lane.b32.xlu0 %v1555, 48
        %v1558 = vpop.permute.xlu0 %1557
        %v1559 = vrot.slane %v1558, 1
        %v1560 = vsel %vm453, %v1558, %v1559
        %v1562 = vadd.f32 %v1552, %v1560
        %s1563 = sld [smem:[#allocation7 + $0x61]]
        %v1564 = vstv %s1563
        %v1565 = vmul.f32 %v1564, %v1030
        %1567 = vrot.lane.b32.xlu0 %v1565, 32
        %v1568 = vpop.permute.xlu0 %1567
        %v1569 = vrot.slane %v1568, 1
        %v1570 = vsel %vm464, %v1568, %v1569
        %v1572 = vadd.f32 %v1562, %v1570
        %v1574 = vperm.slane %v1572, 0
        %v1575 = vperm.slane %v1572, 1
        %v1576 = vperm.slane %v1572, 2
        %1577 = vrot.lane.b32.xlu0 %v1574, 122
        %v1578 = vpop.permute.xlu0 %1577
        %1579 = vrot.lane.b32.xlu0 %v1575, 122
        %v1580 = vpop.permute.xlu0 %1579
        %1581 = vrot.lane.b32.xlu0 %v1576, 122
        %v1582 = vpop.permute.xlu0 %1581
        %v1583 = vsel %vm1014, %v1578, %v1580
        %v1584 = vsel %vm1014, %v1580, %v1582
        %v1587 = vsel %vm938, %v1583, 0.0
        %v1588 = vsel %vm939, %v1584, 0.0
        %v1589 = vadd.f32 %v1507, %v1587
        %v1590 = vadd.f32 %v1508, %v1588
        %v1591 = vxor.u32 %v1589, 2147483648
        %v1592 = vxor.u32 %v1590, 2147483648
        %v1593 = vmul.f32 %v1591, 1.442695
        %v1594 = vpow.pop %v1593
        %v1595 = vmul.f32 %v1592, 1.442695
        %v1596 = vpow.pop %v1595
        %v1597 = vadd.f32 %v1594, 1.0
        %v1598 = vadd.f32 %v1596, 1.0
        %v1599 = vrcp.pop %v1597
        %v1600 = vmul.f32 %v1597, %v1599
        %v1601 = vsub.f32 1.0, %v1600
        %v1602 = vmul.f32 %v1599, %v1601
        %v1603 = vadd.f32 %v1599, %v1602
        %vm1604 = vweird.f32 %v1597
        %vm1605 = vweird.f32 %v1599
        %vm1606 = vmor %vm1604, %vm1605
        %v1607 = vsel %vm1606, %v1599, %v1603
        %v1608 = vand.u32 2147483647, %v1597
        %vm1609 = vcmp.eq.f32.partialorder %v1608, 8.507059e+37
        %v1610 = vand.u32 %v1597, 2147483648
        %v1611 = vor.u32 1.1754944e-38, %v1610
        %v1612 = vsel %vm1609, %v1611, %v1607
        %v1613 = vmul.f32 1.0, %v1612
        %v1614 = vrcp.pop %v1598
        %v1615 = vmul.f32 %v1598, %v1614
        %v1616 = vsub.f32 1.0, %v1615
        %v1617 = vmul.f32 %v1614, %v1616
        %v1618 = vadd.f32 %v1614, %v1617
        %vm1619 = vweird.f32 %v1598
        %vm1620 = vweird.f32 %v1614
        %vm1621 = vmor %vm1619, %vm1620
        %v1622 = vsel %vm1621, %v1614, %v1618
        %v1623 = vand.u32 2147483647, %v1598
        %vm1624 = vcmp.eq.f32.partialorder %v1623, 8.507059e+37
        %v1625 = vand.u32 %v1598, 2147483648
        %v1626 = vor.u32 1.1754944e-38, %v1625
        %v1627 = vsel %vm1624, %v1626, %v1622
        %v1628 = vmul.f32 1.0, %v1627
        %v1629 = vperm.slane %v1613, 0
        %v1630 = vperm.slane %v1628, 0
        %v1633 = vrot.slane %v1630, 4
        %v1634 = vsel %vm237, %v1629, %v1633
        %v1636 = vmul.f32 %v308, %v1634
        %1637 = vst [vmem:[%s229] sm:$0xff] %v1636
        %s1638 = sand.u32 %s119, 1
        %s1639 = scalar_lea.sflag [#allocation5], %s1638
        %s1640 = sand.u32 %s119, 1
        %s1641 = smul.addr %s1640, 8
        %s1642 = scalar_lea.vmem [#allocation8], %s1641
        // Predicated region
        $region45: #{tpu_custom_call.1} parent=35 // pred_check
          %p1643 = pneg %p129
        $region46: #{tpu_custom_call.1} parent=35 // pred_check_branch
          %1645 = sbr.rel (%p1643) target = $region48
        $region47: #{tpu_custom_call.1} parent=35 // pred_region
          %1647 = vsyncadd %s1639, 0
          %s1648 = smul.addr %s22, 2
          %s1649 = smul.addr %s1648, 4
          %s1650 = scalar_lea.hbm %s4, %s1649
          %s1652 = sshll.u32 %s1642, 4
          %s1653 = int_to_ptr.vmem [resolvable:$true] %s1652
          %s1654 = sshll.u32 %s1650, 4
          %s1655 = int_to_ptr.hbm [resolvable:$true] %s1654
          %1657 = dma.vmem_to_hbm [thread:$0]  %s1653, 128, %s1655, %s1639
        $region48: #{tpu_custom_call.1} parent=35 // pred_fallthru
          _
      $region36: #{tpu_custom_call.1} parent=5 // pred_fallthru
        _
      %p1658 = scmp.le.s32.totalorder 2, %s17
      // Predicated region
      $region49: #{tpu_custom_call.1} parent=5 // pred_check
        %p1659 = pneg %p1658
      $region50: #{tpu_custom_call.1} parent=5 // pred_check_branch
        %1661 = sbr.rel (%p1659) target = $region52
      $region51: #{tpu_custom_call.1} parent=5 // pred_region
        %s1662 = ssub.s32 %s17, 2
        // Predicated region
        $region53: #{tpu_custom_call.1} parent=51 // pred_check
          %p1663 = pneg %p135
        $region54: #{tpu_custom_call.1} parent=51 // pred_check_branch
          %1665 = sbr.rel (%p1663) target = $region56
        $region55: #{tpu_custom_call.1} parent=51 // pred_region
          %s1666 = sand.u32 %s120, 1
          %s1667 = scalar_lea.sflag [#allocation5], %s1666
          %s1668 = sand.u32 %s120, 1
          %s1669 = smul.addr %s1668, 8
          %s1670 = scalar_lea.vmem [#allocation8], %s1669
          %1672 = dma.done %s1667, 128
        $region56: #{tpu_custom_call.1} parent=51 // pred_fallthru
          _
      $region52: #{tpu_custom_call.1} parent=5 // pred_fallthru
        _
    $region6: #{tpu_custom_call.1} parent=1 // loop_footer
      %s21 = sadd.s32 1, %s17
    $region7: #{tpu_custom_call.1} parent=1 // loop_footer_branch
      %16 = sbr.rel target = $region3
    $region8: #{tpu_custom_call.1} parent=1 // loop_exit
      _
    %1673 = vsyncpa [#allocation4], 1
    %s1674 = scalar_lea.sflag [#allocation4], 1
    %1675 = vsyncpa %s1674, 1
    %1676 = vsyncpa [#allocation5], 1
    %s1677 = scalar_lea.sflag [#allocation5], 1
    %1678 = vsyncpa %s1677, 1
    %1679 = vsyncpa [#allocation6], 1
    %s1680 = scalar_lea.sflag [#allocation6], 1
    %1681 = vsyncpa %s1680, 1

</llo_original>
